<compile_context>
chip_gen: v5e
topology: v5e:2x2
jax: 0.10.0
libtpu: 0.0.40
codegen_flags: <defaults>
</compile_context>

<pallas_src>
import functools

import jax
import jax.numpy as jnp
from jax.experimental import pallas as pl
from jax.experimental.pallas import tpu as pltpu

LANE = 128
SUBLANE_BF16 = 16   # bf16 packs 2 rows / sublane -> min (16, 128) operand tile


def _round_up(x, m):
    return ((x + m - 1) // m) * m


def _pad2(x, rows, cols):
    r, c = x.shape
    return jnp.pad(x, ((0, rows - r), (0, cols - c)))


# -----------------------------------------------------------------------------
# Fused forward kernel: embed + 3 RGCN layers in ONE pallas_call.
# Activations never leave VMEM; per-relation matmuls accumulate in f32.
# -----------------------------------------------------------------------------
def _fused_kernel(x_ref, adj_ref,
                  w_emb_ref,
                  w_rel1_ref, w_self1_ref,
                  w_rel2_ref, w_self2_ref, w_skip2_ref,
                  w_rel3_ref, w_self3_ref, w_skip3_ref,
                  o_ref, *, num_rels):
    bf16 = jnp.bfloat16

    def dot32(a, b):
        return jnp.dot(a, b, preferred_element_type=jnp.float32)

    # ---- Layer 0 (Embed_Layer): bias is folded into W_emb via the augmented
    #      ones column of x, so a single matmul + relu suffices.
    h = jnp.maximum(dot32(x_ref[...], w_emb_ref[...]), 0.0).astype(bf16)

    def rgcn(h_in, skip_in, w_rel_ref_, w_self_ref_, w_skip_ref_, relu):
        # h_out = act( h @ W_self + skip @ W_skip + sum_r A_r @ (h @ W_r) )
        acc = dot32(h_in, w_self_ref_[...])
        for r in range(num_rels):                      # static unroll, R small
            msg = dot32(h_in, w_rel_ref_[r]).astype(bf16)
            acc = acc + dot32(adj_ref[r], msg)
        if w_skip_ref_ is not None:
            acc = acc + dot32(skip_in, w_skip_ref_[...])
        if relu:
            acc = jnp.maximum(acc, 0.0)
        return acc                                     # f32

    # layer 1: first hidden layer is built with skip=False
    h1 = rgcn(h, None, w_rel1_ref, w_self1_ref, None, relu=True).astype(bf16)
    # layer 2: skip = hps[1] = layer-1 output (k=1)
    h2 = rgcn(h1, h1, w_rel2_ref, w_self2_ref, w_skip2_ref, relu=True).astype(bf16)
    # layer 3: skip = hps[2] = layer-2 output, no activation
    a3 = rgcn(h2, h2, w_rel3_ref, w_self3_ref, w_skip3_ref, relu=False)

    o_ref[...] = a3.astype(o_ref.dtype)


# -----------------------------------------------------------------------------
# Whole forward (padding + pallas_call + final slice) - compiled as one jit.
# -----------------------------------------------------------------------------
def _forward_impl(node_feats, adj, kernel_params, *, num_rels, in_dim,
                  h_dim4, dims_padded):
    D_in_p, D1_p, D2_p, D3_p, D4_p = dims_padded
    n = node_feats.shape[0]
    n_pad = _round_up(max(n, SUBLANE_BF16), SUBLANE_BF16)
    bf16 = jnp.bfloat16

    # Augment x with a ones column (folds the embed bias into W_emb) and pad
    # to (n_pad, D_in_p) bf16 (lane-dense).
    x_aug = jnp.concatenate(
        [node_feats, jnp.ones((n, 1), node_feats.dtype)], axis=1)
    x_p = _pad2(x_aug, n_pad, D_in_p).astype(bf16)

    # Pad adjacency [R, N, N] -> [R, n_pad, n_pad]; zero padding is inert
    # (padded columns kill any contribution from padded rows of h).
    adj_p = jnp.pad(adj, ((0, 0), (0, n_pad - n), (0, n_pad - n))).astype(bf16)

    # --- advisory cost estimate (MXU flops + operand bytes) -------------------
    flops = 2 * n_pad * D_in_p * D1_p
    for d_in_p, d_out_p, has_skip in ((D1_p, D2_p, False),
                                      (D2_p, D3_p, True),
                                      (D3_p, D4_p, True)):
        n_mm = 1 + num_rels + (1 if has_skip else 0)
        flops += 2 * n_pad * d_in_p * d_out_p * n_mm        # self/skip/msg matmuls
        flops += 2 * num_rels * n_pad * n_pad * d_out_p     # adjacency matmuls
    bytes_accessed = (x_p.size * 2 + adj_p.size * 2
                      + sum(int(p.size) * 2 for p in kernel_params)
                      + n_pad * D4_p * 4)

    vmem = pl.BlockSpec(memory_space=pltpu.MemorySpace.VMEM)
    out_p = pl.pallas_call(
        functools.partial(_fused_kernel, num_rels=num_rels),
        out_shape=jax.ShapeDtypeStruct((n_pad, D4_p), jnp.float32),
        in_specs=[vmem] * (2 + len(kernel_params)),
        out_specs=vmem,
        compiler_params=pltpu.CompilerParams(
            vmem_limit_bytes=32 * 1024 * 1024),
        cost_estimate=pl.CostEstimate(flops=flops, transcendentals=0,
                                      bytes_accessed=bytes_accessed),
    )(x_p, adj_p, *kernel_params)

    return out_p[:n, :h_dim4]          # g.ndata.pop('h') -> [N, h_dim4]


# -----------------------------------------------------------------------------
# Classifier: parameter setup + padded bf16 parameter copies built once.
# -----------------------------------------------------------------------------
class PallasClassifier:
    def __init__(self, in_dim, hidden_dim, n_classes, num_rels,
                 h_dim2, h_dim3, h_dim4, key):
        self.in_dim = in_dim
        self.h_dim = hidden_dim
        self.h_dim2 = h_dim2
        self.h_dim3 = h_dim3
        self.h_dim4 = h_dim4
        self.out_dim = n_classes
        self.num_rels = num_rels
        self.k = 1
        self.dims_list = [1, hidden_dim, h_dim2, h_dim3, h_dim4]

        def winit(k, shape):
            fan_in = shape[-2] if len(shape) > 1 else shape[0]
            return (jax.random.normal(k, shape, jnp.float32)
                    / jnp.sqrt(jnp.float32(fan_in)))

        ks = iter(jax.random.split(key, 32))
        # layer 0: embedding
        self.W_emb = winit(next(ks), (in_dim, hidden_dim))
        self.b_emb = winit(next(ks), (1, hidden_dim))
        # hidden layers: (d_in, d_out, d_skip, use_skip, use_relu)
        self.layer_cfg = [
            (hidden_dim, h_dim2, 1,      False, True),
            (h_dim2,     h_dim3, h_dim2, True,  True),
            (h_dim3,     h_dim4, h_dim3, True,  False),
        ]
        self.params = []
        for d_in, d_out, d_skip, _, _ in self.layer_cfg:
            self.params.append(dict(
                W_rel=winit(next(ks), (num_rels, d_in, d_out)),
                W_self=winit(next(ks), (d_in, d_out)),
                W_skip=winit(next(ks), (d_skip, d_out)),
            ))
        # Defined (like the PyTorch module) but never used in forward():
        self.W_final = winit(next(ks), (h_dim4, n_classes))
        self.b_final = winit(next(ks), (1, n_classes))

        # ---- padded bf16 parameters for the fused kernel (built once) -------
        bf16 = jnp.bfloat16
        dp = lambda d: _round_up(d, LANE)
        self.D_in_p = dp(in_dim + 1)                 # +1: folded-bias column
        self.D1_p, self.D2_p = dp(hidden_dim), dp(h_dim2)
        self.D3_p, self.D4_p = dp(h_dim3), dp(h_dim4)

        def pad_w(w, rp, cp):
            return _pad2(w, rp, cp).astype(bf16)

        def pad_wrel(w, rp, cp):
            _, r, c = w.shape
            return jnp.pad(w, ((0, 0), (0, rp - r), (0, cp - c))).astype(bf16)

        # Embed weight with the bias folded in as an extra input row.
        W_emb_aug = jnp.concatenate([self.W_emb, self.b_emb], axis=0)
        p1, p2, p3 = self.params
        self.kernel_params = (
            pad_w(W_emb_aug, self.D_in_p, self.D1_p),
            pad_wrel(p1["W_rel"], self.D1_p, self.D2_p),
            pad_w(p1["W_self"], self.D1_p, self.D2_p),
            pad_wrel(p2["W_rel"], self.D2_p, self.D3_p),
            pad_w(p2["W_self"], self.D2_p, self.D3_p),
            pad_w(p2["W_skip"], self.D2_p, self.D3_p),
            pad_wrel(p3["W_rel"], self.D3_p, self.D4_p),
            pad_w(p3["W_self"], self.D3_p, self.D4_p),
            pad_w(p3["W_skip"], self.D3_p, self.D4_p),
        )

        # Jitted forward: padding + pallas_call + slice compile into one graph.
        self._forward_jit = jax.jit(functools.partial(
            _forward_impl,
            num_rels=num_rels, in_dim=in_dim, h_dim4=h_dim4,
            dims_padded=(self.D_in_p, self.D1_p, self.D2_p,
                         self.D3_p, self.D4_p)))

    def forward(self, node_feats, adj):
        return self._forward_jit(node_feats, adj, self.kernel_params)


# -----------------------------------------------------------------------------
# Pure-JAX reference mirroring the kernel numerics (bf16 operands, f32 accum).
# NOTE: this validates the Pallas kernel against the same bf16/f32 recipe, not
# the original fp32 PyTorch math.
# -----------------------------------------------------------------------------
def ref_forward(model, node_feats, adj):
    bf16 = jnp.bfloat16

    def dot32(a, b):
        return jnp.dot(a.astype(bf16), b.astype(bf16),
                       preferred_element_type=jnp.float32)

    h = jnp.maximum(dot32(node_feats, model.W_emb)
                    + model.b_emb.astype(bf16).astype(jnp.float32), 0.0)
    hs = [h.astype(bf16)]
    acc = None
    for i, (d_in, d_out, d_skip, use_skip, use_relu) in enumerate(model.layer_cfg):
        p = model.params[i]
        h_in = hs[-1]
        acc = dot32(h_in, p["W_self"])
        for r in range(model.num_rels):
            msg = dot32(h_in, p["W_rel"][r]).astype(bf16)
            acc = acc + jnp.dot(adj[r].astype(bf16), msg,
                                preferred_element_type=jnp.float32)
        if use_skip:
            acc = acc + dot32(h_in, p["W_skip"])   # skip = hps[i] = layer input (k=1)
        if use_relu:
            acc = jnp.maximum(acc, 0.0)
        hs.append(acc.astype(bf16))
    return acc                                     # last layer: f32, no relu


# -----------------------------------------------------------------------------
if __name__ == "__main__":
    # Small synthetic graph: N nodes, R relations, dense per-relation adjacency.
    N, R = 16, 3
    in_dim, h_dim, h_dim2, h_dim3, h_dim4, n_classes = 8, 32, 24, 16, 32, 4

    key = jax.random.PRNGKey(0)
    k_feat, k_adj, k_param = jax.random.split(key, 3)

    node_feats = jax.random.normal(k_feat, (N, in_dim), jnp.float32)
    adj = jax.random.bernoulli(k_adj, 0.3, (R, N, N)).astype(jnp.float32)

    model = PallasClassifier(in_dim, h_dim, n_classes, R,
                             h_dim2, h_dim3, h_dim4, k_param)

    out = model.forward(node_feats, adj)
    out = jax.block_until_ready(out)

    ref = ref_forward(model, node_feats, adj)
    assert out.shape == (N, h_dim4)
    assert jnp.allclose(out, ref, rtol=1e-2, atol=1e-2), "mismatch vs JAX reference"

    print("KERNEL_OK")
</pallas_src>

<mosaic_0001>
module attributes {stable_mosaic.version = 11 : i64} {
  func.func @_fused_kernel(%arg0: memref<16x128xbf16, #tpu.memory_space<vmem>>, %arg1: memref<3x16x16xbf16, #tpu.memory_space<vmem>>, %arg2: memref<128x128xbf16, #tpu.memory_space<vmem>>, %arg3: memref<3x128x128xbf16, #tpu.memory_space<vmem>>, %arg4: memref<128x128xbf16, #tpu.memory_space<vmem>>, %arg5: memref<3x128x128xbf16, #tpu.memory_space<vmem>>, %arg6: memref<128x128xbf16, #tpu.memory_space<vmem>>, %arg7: memref<128x128xbf16, #tpu.memory_space<vmem>>, %arg8: memref<3x128x128xbf16, #tpu.memory_space<vmem>>, %arg9: memref<128x128xbf16, #tpu.memory_space<vmem>>, %arg10: memref<128x128xbf16, #tpu.memory_space<vmem>>, %arg11: memref<16x128xf32, #tpu.memory_space<vmem>>) attributes {dimension_semantics = [], scalar_prefetch = 0 : i64, scratch_operands = 0 : i64, tpu.core_type = #tpu.core_type<tc>} {
    %c0 = arith.constant 0 : index
    %c0_0 = arith.constant 0 : index
    %0 = vector.load %arg0[%c0, %c0_0] : memref<16x128xbf16, #tpu.memory_space<vmem>>, vector<16x128xbf16>
    %c0_1 = arith.constant 0 : index
    %c0_2 = arith.constant 0 : index
    %1 = vector.load %arg2[%c0_1, %c0_2] : memref<128x128xbf16, #tpu.memory_space<vmem>>, vector<128x128xbf16>
    %cst = arith.constant dense<0.000000e+00> : vector<16x128xf32>
    %2 = tpu.matmul %0, %1, %cst {dimension_numbers = #tpu.dot_dimension_numbers<[1], [0], [0], [1], [0, 0, 1, 1], [], []>} : vector<16x128xbf16>, vector<128x128xbf16>, vector<16x128xf32> -> vector<16x128xf32>
    %cst_3 = arith.constant 0.000000e+00 : f32
    %3 = vector.broadcast %cst_3 : f32 to vector<16x128xf32>
    %4 = arith.maximumf %2, %3 : vector<16x128xf32>
    %5 = arith.truncf %4 : vector<16x128xf32> to vector<16x128xbf16>
    %c0_4 = arith.constant 0 : index
    %c0_5 = arith.constant 0 : index
    %6 = vector.load %arg4[%c0_4, %c0_5] : memref<128x128xbf16, #tpu.memory_space<vmem>>, vector<128x128xbf16>
    %cst_6 = arith.constant dense<0.000000e+00> : vector<16x128xf32>
    %7 = tpu.matmul %5, %6, %cst_6 {dimension_numbers = #tpu.dot_dimension_numbers<[1], [0], [0], [1], [0, 0, 1, 1], [], []>} : vector<16x128xbf16>, vector<128x128xbf16>, vector<16x128xf32> -> vector<16x128xf32>
    %c0_7 = arith.constant 0 : index
    %c0_8 = arith.constant 0 : index
    %c0_9 = arith.constant 0 : index
    %8 = vector.load %arg3[%c0_7, %c0_8, %c0_9] : memref<3x128x128xbf16, #tpu.memory_space<vmem>>, vector<1x128x128xbf16>
    %9 = vector.shape_cast %8 : vector<1x128x128xbf16> to vector<128x128xbf16>
    %cst_10 = arith.constant dense<0.000000e+00> : vector<16x128xf32>
    %10 = tpu.matmul %5, %9, %cst_10 {dimension_numbers = #tpu.dot_dimension_numbers<[1], [0], [0], [1], [0, 0, 1, 1], [], []>} : vector<16x128xbf16>, vector<128x128xbf16>, vector<16x128xf32> -> vector<16x128xf32>
    %11 = arith.truncf %10 : vector<16x128xf32> to vector<16x128xbf16>
    %c0_11 = arith.constant 0 : index
    %c0_12 = arith.constant 0 : index
    %c0_13 = arith.constant 0 : index
    %12 = vector.load %arg1[%c0_11, %c0_12, %c0_13] : memref<3x16x16xbf16, #tpu.memory_space<vmem>>, vector<1x16x16xbf16>
    %13 = vector.shape_cast %12 : vector<1x16x16xbf16> to vector<16x16xbf16>
    %cst_14 = arith.constant dense<0.000000e+00> : vector<16x128xf32>
    %14 = tpu.matmul %13, %11, %cst_14 {dimension_numbers = #tpu.dot_dimension_numbers<[1], [0], [0], [1], [0, 0, 1, 1], [], []>} : vector<16x16xbf16>, vector<16x128xbf16>, vector<16x128xf32> -> vector<16x128xf32>
    %15 = arith.addf %7, %14 : vector<16x128xf32>
    %c1 = arith.constant 1 : index
    %c0_15 = arith.constant 0 : index
    %c0_16 = arith.constant 0 : index
    %16 = vector.load %arg3[%c1, %c0_15, %c0_16] : memref<3x128x128xbf16, #tpu.memory_space<vmem>>, vector<1x128x128xbf16>
    %17 = vector.shape_cast %16 : vector<1x128x128xbf16> to vector<128x128xbf16>
    %cst_17 = arith.constant dense<0.000000e+00> : vector<16x128xf32>
    %18 = tpu.matmul %5, %17, %cst_17 {dimension_numbers = #tpu.dot_dimension_numbers<[1], [0], [0], [1], [0, 0, 1, 1], [], []>} : vector<16x128xbf16>, vector<128x128xbf16>, vector<16x128xf32> -> vector<16x128xf32>
    %19 = arith.truncf %18 : vector<16x128xf32> to vector<16x128xbf16>
    %c1_18 = arith.constant 1 : index
    %c0_19 = arith.constant 0 : index
    %c0_20 = arith.constant 0 : index
    %20 = vector.load %arg1[%c1_18, %c0_19, %c0_20] : memref<3x16x16xbf16, #tpu.memory_space<vmem>>, vector<1x16x16xbf16>
    %21 = vector.shape_cast %20 : vector<1x16x16xbf16> to vector<16x16xbf16>
    %cst_21 = arith.constant dense<0.000000e+00> : vector<16x128xf32>
    %22 = tpu.matmul %21, %19, %cst_21 {dimension_numbers = #tpu.dot_dimension_numbers<[1], [0], [0], [1], [0, 0, 1, 1], [], []>} : vector<16x16xbf16>, vector<16x128xbf16>, vector<16x128xf32> -> vector<16x128xf32>
    %23 = arith.addf %15, %22 : vector<16x128xf32>
    %c2 = arith.constant 2 : index
    %c0_22 = arith.constant 0 : index
    %c0_23 = arith.constant 0 : index
    %24 = vector.load %arg3[%c2, %c0_22, %c0_23] : memref<3x128x128xbf16, #tpu.memory_space<vmem>>, vector<1x128x128xbf16>
    %25 = vector.shape_cast %24 : vector<1x128x128xbf16> to vector<128x128xbf16>
    %cst_24 = arith.constant dense<0.000000e+00> : vector<16x128xf32>
    %26 = tpu.matmul %5, %25, %cst_24 {dimension_numbers = #tpu.dot_dimension_numbers<[1], [0], [0], [1], [0, 0, 1, 1], [], []>} : vector<16x128xbf16>, vector<128x128xbf16>, vector<16x128xf32> -> vector<16x128xf32>
    %27 = arith.truncf %26 : vector<16x128xf32> to vector<16x128xbf16>
    %c2_25 = arith.constant 2 : index
    %c0_26 = arith.constant 0 : index
    %c0_27 = arith.constant 0 : index
    %28 = vector.load %arg1[%c2_25, %c0_26, %c0_27] : memref<3x16x16xbf16, #tpu.memory_space<vmem>>, vector<1x16x16xbf16>
    %29 = vector.shape_cast %28 : vector<1x16x16xbf16> to vector<16x16xbf16>
    %cst_28 = arith.constant dense<0.000000e+00> : vector<16x128xf32>
    %30 = tpu.matmul %29, %27, %cst_28 {dimension_numbers = #tpu.dot_dimension_numbers<[1], [0], [0], [1], [0, 0, 1, 1], [], []>} : vector<16x16xbf16>, vector<16x128xbf16>, vector<16x128xf32> -> vector<16x128xf32>
    %31 = arith.addf %23, %30 : vector<16x128xf32>
    %cst_29 = arith.constant 0.000000e+00 : f32
    %32 = vector.broadcast %cst_29 : f32 to vector<16x128xf32>
    %33 = arith.maximumf %31, %32 : vector<16x128xf32>
    %34 = arith.truncf %33 : vector<16x128xf32> to vector<16x128xbf16>
    %c0_30 = arith.constant 0 : index
    %c0_31 = arith.constant 0 : index
    %35 = vector.load %arg6[%c0_30, %c0_31] : memref<128x128xbf16, #tpu.memory_space<vmem>>, vector<128x128xbf16>
    %cst_32 = arith.constant dense<0.000000e+00> : vector<16x128xf32>
    %36 = tpu.matmul %34, %35, %cst_32 {dimension_numbers = #tpu.dot_dimension_numbers<[1], [0], [0], [1], [0, 0, 1, 1], [], []>} : vector<16x128xbf16>, vector<128x128xbf16>, vector<16x128xf32> -> vector<16x128xf32>
    %c0_33 = arith.constant 0 : index
    %c0_34 = arith.constant 0 : index
    %c0_35 = arith.constant 0 : index
    %37 = vector.load %arg5[%c0_33, %c0_34, %c0_35] : memref<3x128x128xbf16, #tpu.memory_space<vmem>>, vector<1x128x128xbf16>
    %38 = vector.shape_cast %37 : vector<1x128x128xbf16> to vector<128x128xbf16>
    %cst_36 = arith.constant dense<0.000000e+00> : vector<16x128xf32>
    %39 = tpu.matmul %34, %38, %cst_36 {dimension_numbers = #tpu.dot_dimension_numbers<[1], [0], [0], [1], [0, 0, 1, 1], [], []>} : vector<16x128xbf16>, vector<128x128xbf16>, vector<16x128xf32> -> vector<16x128xf32>
    %40 = arith.truncf %39 : vector<16x128xf32> to vector<16x128xbf16>
    %c0_37 = arith.constant 0 : index
    %c0_38 = arith.constant 0 : index
    %c0_39 = arith.constant 0 : index
    %41 = vector.load %arg1[%c0_37, %c0_38, %c0_39] : memref<3x16x16xbf16, #tpu.memory_space<vmem>>, vector<1x16x16xbf16>
    %42 = vector.shape_cast %41 : vector<1x16x16xbf16> to vector<16x16xbf16>
    %cst_40 = arith.constant dense<0.000000e+00> : vector<16x128xf32>
    %43 = tpu.matmul %42, %40, %cst_40 {dimension_numbers = #tpu.dot_dimension_numbers<[1], [0], [0], [1], [0, 0, 1, 1], [], []>} : vector<16x16xbf16>, vector<16x128xbf16>, vector<16x128xf32> -> vector<16x128xf32>
    %44 = arith.addf %36, %43 : vector<16x128xf32>
    %c1_41 = arith.constant 1 : index
    %c0_42 = arith.constant 0 : index
    %c0_43 = arith.constant 0 : index
    %45 = vector.load %arg5[%c1_41, %c0_42, %c0_43] : memref<3x128x128xbf16, #tpu.memory_space<vmem>>, vector<1x128x128xbf16>
    %46 = vector.shape_cast %45 : vector<1x128x128xbf16> to vector<128x128xbf16>
    %cst_44 = arith.constant dense<0.000000e+00> : vector<16x128xf32>
    %47 = tpu.matmul %34, %46, %cst_44 {dimension_numbers = #tpu.dot_dimension_numbers<[1], [0], [0], [1], [0, 0, 1, 1], [], []>} : vector<16x128xbf16>, vector<128x128xbf16>, vector<16x128xf32> -> vector<16x128xf32>
    %48 = arith.truncf %47 : vector<16x128xf32> to vector<16x128xbf16>
    %c1_45 = arith.constant 1 : index
    %c0_46 = arith.constant 0 : index
    %c0_47 = arith.constant 0 : index
    %49 = vector.load %arg1[%c1_45, %c0_46, %c0_47] : memref<3x16x16xbf16, #tpu.memory_space<vmem>>, vector<1x16x16xbf16>
    %50 = vector.shape_cast %49 : vector<1x16x16xbf16> to vector<16x16xbf16>
    %cst_48 = arith.constant dense<0.000000e+00> : vector<16x128xf32>
    %51 = tpu.matmul %50, %48, %cst_48 {dimension_numbers = #tpu.dot_dimension_numbers<[1], [0], [0], [1], [0, 0, 1, 1], [], []>} : vector<16x16xbf16>, vector<16x128xbf16>, vector<16x128xf32> -> vector<16x128xf32>
    %52 = arith.addf %44, %51 : vector<16x128xf32>
    %c2_49 = arith.constant 2 : index
    %c0_50 = arith.constant 0 : index
    %c0_51 = arith.constant 0 : index
    %53 = vector.load %arg5[%c2_49, %c0_50, %c0_51] : memref<3x128x128xbf16, #tpu.memory_space<vmem>>, vector<1x128x128xbf16>
    %54 = vector.shape_cast %53 : vector<1x128x128xbf16> to vector<128x128xbf16>
    %cst_52 = arith.constant dense<0.000000e+00> : vector<16x128xf32>
    %55 = tpu.matmul %34, %54, %cst_52 {dimension_numbers = #tpu.dot_dimension_numbers<[1], [0], [0], [1], [0, 0, 1, 1], [], []>} : vector<16x128xbf16>, vector<128x128xbf16>, vector<16x128xf32> -> vector<16x128xf32>
    %56 = arith.truncf %55 : vector<16x128xf32> to vector<16x128xbf16>
    %c2_53 = arith.constant 2 : index
    %c0_54 = arith.constant 0 : index
    %c0_55 = arith.constant 0 : index
    %57 = vector.load %arg1[%c2_53, %c0_54, %c0_55] : memref<3x16x16xbf16, #tpu.memory_space<vmem>>, vector<1x16x16xbf16>
    %58 = vector.shape_cast %57 : vector<1x16x16xbf16> to vector<16x16xbf16>
    %cst_56 = arith.constant dense<0.000000e+00> : vector<16x128xf32>
    %59 = tpu.matmul %58, %56, %cst_56 {dimension_numbers = #tpu.dot_dimension_numbers<[1], [0], [0], [1], [0, 0, 1, 1], [], []>} : vector<16x16xbf16>, vector<16x128xbf16>, vector<16x128xf32> -> vector<16x128xf32>
    %60 = arith.addf %52, %59 : vector<16x128xf32>
    %c0_57 = arith.constant 0 : index
    %c0_58 = arith.constant 0 : index
    %61 = vector.load %arg7[%c0_57, %c0_58] : memref<128x128xbf16, #tpu.memory_space<vmem>>, vector<128x128xbf16>
    %cst_59 = arith.constant dense<0.000000e+00> : vector<16x128xf32>
    %62 = tpu.matmul %34, %61, %cst_59 {dimension_numbers = #tpu.dot_dimension_numbers<[1], [0], [0], [1], [0, 0, 1, 1], [], []>} : vector<16x128xbf16>, vector<128x128xbf16>, vector<16x128xf32> -> vector<16x128xf32>
    %63 = arith.addf %60, %62 : vector<16x128xf32>
    %cst_60 = arith.constant 0.000000e+00 : f32
    %64 = vector.broadcast %cst_60 : f32 to vector<16x128xf32>
    %65 = arith.maximumf %63, %64 : vector<16x128xf32>
    %66 = arith.truncf %65 : vector<16x128xf32> to vector<16x128xbf16>
    %c0_61 = arith.constant 0 : index
    %c0_62 = arith.constant 0 : index
    %67 = vector.load %arg9[%c0_61, %c0_62] : memref<128x128xbf16, #tpu.memory_space<vmem>>, vector<128x128xbf16>
    %cst_63 = arith.constant dense<0.000000e+00> : vector<16x128xf32>
    %68 = tpu.matmul %66, %67, %cst_63 {dimension_numbers = #tpu.dot_dimension_numbers<[1], [0], [0], [1], [0, 0, 1, 1], [], []>} : vector<16x128xbf16>, vector<128x128xbf16>, vector<16x128xf32> -> vector<16x128xf32>
    %c0_64 = arith.constant 0 : index
    %c0_65 = arith.constant 0 : index
    %c0_66 = arith.constant 0 : index
    %69 = vector.load %arg8[%c0_64, %c0_65, %c0_66] : memref<3x128x128xbf16, #tpu.memory_space<vmem>>, vector<1x128x128xbf16>
    %70 = vector.shape_cast %69 : vector<1x128x128xbf16> to vector<128x128xbf16>
    %cst_67 = arith.constant dense<0.000000e+00> : vector<16x128xf32>
    %71 = tpu.matmul %66, %70, %cst_67 {dimension_numbers = #tpu.dot_dimension_numbers<[1], [0], [0], [1], [0, 0, 1, 1], [], []>} : vector<16x128xbf16>, vector<128x128xbf16>, vector<16x128xf32> -> vector<16x128xf32>
    %72 = arith.truncf %71 : vector<16x128xf32> to vector<16x128xbf16>
    %c0_68 = arith.constant 0 : index
    %c0_69 = arith.constant 0 : index
    %c0_70 = arith.constant 0 : index
    %73 = vector.load %arg1[%c0_68, %c0_69, %c0_70] : memref<3x16x16xbf16, #tpu.memory_space<vmem>>, vector<1x16x16xbf16>
    %74 = vector.shape_cast %73 : vector<1x16x16xbf16> to vector<16x16xbf16>
    %cst_71 = arith.constant dense<0.000000e+00> : vector<16x128xf32>
    %75 = tpu.matmul %74, %72, %cst_71 {dimension_numbers = #tpu.dot_dimension_numbers<[1], [0], [0], [1], [0, 0, 1, 1], [], []>} : vector<16x16xbf16>, vector<16x128xbf16>, vector<16x128xf32> -> vector<16x128xf32>
    %76 = arith.addf %68, %75 : vector<16x128xf32>
    %c1_72 = arith.constant 1 : index
    %c0_73 = arith.constant 0 : index
    %c0_74 = arith.constant 0 : index
    %77 = vector.load %arg8[%c1_72, %c0_73, %c0_74] : memref<3x128x128xbf16, #tpu.memory_space<vmem>>, vector<1x128x128xbf16>
    %78 = vector.shape_cast %77 : vector<1x128x128xbf16> to vector<128x128xbf16>
    %cst_75 = arith.constant dense<0.000000e+00> : vector<16x128xf32>
    %79 = tpu.matmul %66, %78, %cst_75 {dimension_numbers = #tpu.dot_dimension_numbers<[1], [0], [0], [1], [0, 0, 1, 1], [], []>} : vector<16x128xbf16>, vector<128x128xbf16>, vector<16x128xf32> -> vector<16x128xf32>
    %80 = arith.truncf %79 : vector<16x128xf32> to vector<16x128xbf16>
    %c1_76 = arith.constant 1 : index
    %c0_77 = arith.constant 0 : index
    %c0_78 = arith.constant 0 : index
    %81 = vector.load %arg1[%c1_76, %c0_77, %c0_78] : memref<3x16x16xbf16, #tpu.memory_space<vmem>>, vector<1x16x16xbf16>
    %82 = vector.shape_cast %81 : vector<1x16x16xbf16> to vector<16x16xbf16>
    %cst_79 = arith.constant dense<0.000000e+00> : vector<16x128xf32>
    %83 = tpu.matmul %82, %80, %cst_79 {dimension_numbers = #tpu.dot_dimension_numbers<[1], [0], [0], [1], [0, 0, 1, 1], [], []>} : vector<16x16xbf16>, vector<16x128xbf16>, vector<16x128xf32> -> vector<16x128xf32>
    %84 = arith.addf %76, %83 : vector<16x128xf32>
    %c2_80 = arith.constant 2 : index
    %c0_81 = arith.constant 0 : index
    %c0_82 = arith.constant 0 : index
    %85 = vector.load %arg8[%c2_80, %c0_81, %c0_82] : memref<3x128x128xbf16, #tpu.memory_space<vmem>>, vector<1x128x128xbf16>
    %86 = vector.shape_cast %85 : vector<1x128x128xbf16> to vector<128x128xbf16>
    %cst_83 = arith.constant dense<0.000000e+00> : vector<16x128xf32>
    %87 = tpu.matmul %66, %86, %cst_83 {dimension_numbers = #tpu.dot_dimension_numbers<[1], [0], [0], [1], [0, 0, 1, 1], [], []>} : vector<16x128xbf16>, vector<128x128xbf16>, vector<16x128xf32> -> vector<16x128xf32>
    %88 = arith.truncf %87 : vector<16x128xf32> to vector<16x128xbf16>
    %c2_84 = arith.constant 2 : index
    %c0_85 = arith.constant 0 : index
    %c0_86 = arith.constant 0 : index
    %89 = vector.load %arg1[%c2_84, %c0_85, %c0_86] : memref<3x16x16xbf16, #tpu.memory_space<vmem>>, vector<1x16x16xbf16>
    %90 = vector.shape_cast %89 : vector<1x16x16xbf16> to vector<16x16xbf16>
    %cst_87 = arith.constant dense<0.000000e+00> : vector<16x128xf32>
    %91 = tpu.matmul %90, %88, %cst_87 {dimension_numbers = #tpu.dot_dimension_numbers<[1], [0], [0], [1], [0, 0, 1, 1], [], []>} : vector<16x16xbf16>, vector<16x128xbf16>, vector<16x128xf32> -> vector<16x128xf32>
    %92 = arith.addf %84, %91 : vector<16x128xf32>
    %c0_88 = arith.constant 0 : index
    %c0_89 = arith.constant 0 : index
    %93 = vector.load %arg10[%c0_88, %c0_89] : memref<128x128xbf16, #tpu.memory_space<vmem>>, vector<128x128xbf16>
    %cst_90 = arith.constant dense<0.000000e+00> : vector<16x128xf32>
    %94 = tpu.matmul %66, %93, %cst_90 {dimension_numbers = #tpu.dot_dimension_numbers<[1], [0], [0], [1], [0, 0, 1, 1], [], []>} : vector<16x128xbf16>, vector<128x128xbf16>, vector<16x128xf32> -> vector<16x128xf32>
    %95 = arith.addf %92, %94 : vector<16x128xf32>
    %c0_91 = arith.constant 0 : index
    %c0_92 = arith.constant 0 : index
    %96 = vector.load %arg11[%c0_91, %c0_92] : memref<16x128xf32, #tpu.memory_space<vmem>>, vector<16x128xf32>
    tpu.vector_store %arg11[%c0_91, %c0_92], %95 {strides = array<i32>} : memref<16x128xf32, #tpu.memory_space<vmem>>, vector<16x128xf32>,
    return
  }
}

</mosaic_0001>

<llo_original>
// kernel: _forward_impl.1
$region0: #{_forward_impl.1}
  #allocation0 [shape = 'u32[]', space=smem, size = 0x4, offset = 0x4, fixed_abs, tag = 'smem constant byte address 0x4 - core index']
  #allocation1 [shape = 'u32[72,128]{1,0:T(1,128)}', space=vmem, size = 0x9000, scoped, tag = 'internal scratch']
  %s0 = inlined_call_operand.vmem [shape: bf16[16,128], index: 0, kind: input, shape index: {}]
  %s1 = inlined_call_operand.vmem [shape: bf16[3,16,16], index: 1, kind: input, shape index: {}]
  %s2 = inlined_call_operand.vmem [shape: bf16[128,128], index: 2, kind: input, shape index: {}]
  %s3 = inlined_call_operand.hbm [shape: bf16[3,128,128], index: 3, kind: input, shape index: {}]
  %s4 = inlined_call_operand.hbm [shape: bf16[128,128], index: 4, kind: input, shape index: {}]
  %s5 = inlined_call_operand.hbm [shape: bf16[3,128,128], index: 5, kind: input, shape index: {}]
  %s6 = inlined_call_operand.hbm [shape: bf16[128,128], index: 6, kind: input, shape index: {}]
  %s7 = inlined_call_operand.hbm [shape: bf16[128,128], index: 7, kind: input, shape index: {}]
  %s8 = inlined_call_operand.hbm [shape: bf16[3,128,128], index: 8, kind: input, shape index: {}]
  %s9 = inlined_call_operand.hbm [shape: bf16[128,128], index: 9, kind: input, shape index: {}]
  %s10 = inlined_call_operand.hbm [shape: bf16[128,128], index: 10, kind: input, shape index: {}]
  %s11 = inlined_call_operand.hbm [shape: f32[16,128], index: 11, kind: output, shape index: {}]
  %s12 = sld [smem:[#allocation0]]
  $region86: #{_forward_impl.1} parent=0
    _
  %s14 = ssub.s32 1, %s12
  %s15 = scalar_select 0, %s14, %s12
  $region1: #{_forward_impl.1} parent=0
    #allocation2 [shape = 'u8[98304]{0}', space=vmem, size = 0x18000, scoped, tag = 'input window, operand 3, single buffered']
    #allocation3 [shape = 's32[1]{0}', space=sflag, size = 0x4, scoped, tag = 'scoped memory for _forward_impl.1']
    #allocation4 [shape = 's32[1]{0}', space=sflag, size = 0x4, scoped, tag = 'scoped memory for _forward_impl.1']
    #allocation5 [shape = 'u8[32768]{0}', space=vmem, size = 0x8000, scoped, tag = 'input window, operand 4, single buffered']
    #allocation6 [shape = 's32[1]{0}', space=sflag, size = 0x4, scoped, tag = 'scoped memory for _forward_impl.1']
    #allocation7 [shape = 'u8[98304]{0}', space=vmem, size = 0x18000, scoped, tag = 'input window, operand 5, single buffered']
    #allocation8 [shape = 'u8[32768]{0}', space=vmem, size = 0x8000, scoped, tag = 'input window, operand 6, single buffered']
    #allocation9 [shape = 's32[1]{0}', space=sflag, size = 0x4, scoped, tag = 'scoped memory for _forward_impl.1']
    #allocation10 [shape = 'u8[32768]{0}', space=vmem, size = 0x8000, scoped, tag = 'input window, operand 7, single buffered']
    #allocation11 [shape = 'u8[98304]{0}', space=vmem, size = 0x18000, scoped, tag = 'input window, operand 8, single buffered']
    #allocation12 [shape = 's32[1]{0}', space=sflag, size = 0x4, scoped, tag = 'scoped memory for _forward_impl.1']
    #allocation13 [shape = 'u8[32768]{0}', space=vmem, size = 0x8000, scoped, tag = 'input window, operand 9, single buffered']
    #allocation14 [shape = 'u8[32768]{0}', space=vmem, size = 0x8000, scoped, tag = 'input window, operand 10, single buffered']
    #allocation15 [shape = 's32[1]{0}', space=sflag, size = 0x4, scoped, tag = 'scoped memory for _forward_impl.1']
    #allocation16 [shape = 'u8[8192]{0}', space=vmem, size = 0x2000, scoped, tag = 'output window, operand 0, single buffered']
    %16 = vsyncpa [#allocation3], 0
    %17 = vsyncpa [#allocation6], 0
    %18 = vsyncpa [#allocation9], 0
    %19 = vsyncpa [#allocation12], 0
    %20 = vsyncpa [#allocation15], 0
    %21 = vsyncpa [#allocation4], 0
    // Predicated region
    $region2: #{_forward_impl.1} parent=1 // pred_check
      _
    $region3: #{_forward_impl.1} parent=1 // pred_check_branch
      %23 = sbr.rel (0) target = $region5
    $region4: #{_forward_impl.1} parent=1 // pred_region
      _
    $region5: #{_forward_impl.1} parent=1 // pred_fallthru
      _
    // Predicated region
    $region6: #{_forward_impl.1} parent=1 // pred_check
      _
    $region7: #{_forward_impl.1} parent=1 // pred_check_branch
      %25 = sbr.rel (0) target = $region9
    $region8: #{_forward_impl.1} parent=1 // pred_region
      _
    $region9: #{_forward_impl.1} parent=1 // pred_fallthru
      _
    // Predicated region
    $region10: #{_forward_impl.1} parent=1 // pred_check
      _
    $region11: #{_forward_impl.1} parent=1 // pred_check_branch
      %27 = sbr.rel (0) target = $region13
    $region12: #{_forward_impl.1} parent=1 // pred_region
      _
    $region13: #{_forward_impl.1} parent=1 // pred_fallthru
      _
    // Predicated region
    $region14: #{_forward_impl.1} parent=1 // pred_check
      _
    $region15: #{_forward_impl.1} parent=1 // pred_check_branch
      %29 = sbr.rel (0) target = $region17
    $region16: #{_forward_impl.1} parent=1 // pred_region
      %31 = vsyncadd [#allocation3], 0
      %s32 = sshll.u32 %s3, 4
      %s33 = int_to_ptr.hbm [resolvable:$true] %s32
      %s34 = sshll.u32 [#allocation2], 4
      %s35 = int_to_ptr.vmem [resolvable:$true] %s34
      %40 = dma.hbm_to_vmem [thread:$0]  %s33, 3072, %s35, [#allocation3], 64, 64, 4
    $region17: #{_forward_impl.1} parent=1 // pred_fallthru
      _
    // Predicated region
    $region18: #{_forward_impl.1} parent=1 // pred_check
      _
    $region19: #{_forward_impl.1} parent=1 // pred_check_branch
      %42 = sbr.rel (0) target = $region21
    $region20: #{_forward_impl.1} parent=1 // pred_region
      %44 = vsyncadd [#allocation6], 0
      %s45 = sshll.u32 %s4, 4
      %s46 = int_to_ptr.hbm [resolvable:$true] %s45
      %s47 = sshll.u32 [#allocation5], 4
      %s48 = int_to_ptr.vmem [resolvable:$true] %s47
      %53 = dma.hbm_to_vmem [thread:$0]  %s46, 1024, %s48, [#allocation6], 64, 64, 4
    $region21: #{_forward_impl.1} parent=1 // pred_fallthru
      _
    // Predicated region
    $region22: #{_forward_impl.1} parent=1 // pred_check
      _
    $region23: #{_forward_impl.1} parent=1 // pred_check_branch
      %55 = sbr.rel (0) target = $region25
    $region24: #{_forward_impl.1} parent=1 // pred_region
      %57 = vsyncadd [#allocation6], 0
      %s58 = sshll.u32 %s5, 4
      %s59 = int_to_ptr.hbm [resolvable:$true] %s58
      %s60 = sshll.u32 [#allocation7], 4
      %s61 = int_to_ptr.vmem [resolvable:$true] %s60
      %66 = dma.hbm_to_vmem [thread:$0]  %s59, 3072, %s61, [#allocation6], 64, 64, 4
    $region25: #{_forward_impl.1} parent=1 // pred_fallthru
      _
    // Predicated region
    $region26: #{_forward_impl.1} parent=1 // pred_check
      _
    $region27: #{_forward_impl.1} parent=1 // pred_check_branch
      %68 = sbr.rel (0) target = $region29
    $region28: #{_forward_impl.1} parent=1 // pred_region
      %70 = vsyncadd [#allocation9], 0
      %s71 = sshll.u32 %s6, 4
      %s72 = int_to_ptr.hbm [resolvable:$true] %s71
      %s73 = sshll.u32 [#allocation8], 4
      %s74 = int_to_ptr.vmem [resolvable:$true] %s73
      %79 = dma.hbm_to_vmem [thread:$0]  %s72, 1024, %s74, [#allocation9], 64, 64, 4
    $region29: #{_forward_impl.1} parent=1 // pred_fallthru
      _
    // Predicated region
    $region30: #{_forward_impl.1} parent=1 // pred_check
      _
    $region31: #{_forward_impl.1} parent=1 // pred_check_branch
      %81 = sbr.rel (0) target = $region33
    $region32: #{_forward_impl.1} parent=1 // pred_region
      %83 = vsyncadd [#allocation9], 0
      %s84 = sshll.u32 %s7, 4
      %s85 = int_to_ptr.hbm [resolvable:$true] %s84
      %s86 = sshll.u32 [#allocation10], 4
      %s87 = int_to_ptr.vmem [resolvable:$true] %s86
      %92 = dma.hbm_to_vmem [thread:$0]  %s85, 1024, %s87, [#allocation9], 64, 64, 4
    $region33: #{_forward_impl.1} parent=1 // pred_fallthru
      _
    // Predicated region
    $region34: #{_forward_impl.1} parent=1 // pred_check
      _
    $region35: #{_forward_impl.1} parent=1 // pred_check_branch
      %94 = sbr.rel (0) target = $region37
    $region36: #{_forward_impl.1} parent=1 // pred_region
      %96 = vsyncadd [#allocation12], 0
      %s97 = sshll.u32 %s8, 4
      %s98 = int_to_ptr.hbm [resolvable:$true] %s97
      %s99 = sshll.u32 [#allocation11], 4
      %s100 = int_to_ptr.vmem [resolvable:$true] %s99
      %105 = dma.hbm_to_vmem [thread:$0]  %s98, 3072, %s100, [#allocation12], 64, 64, 4
    $region37: #{_forward_impl.1} parent=1 // pred_fallthru
      _
    // Predicated region
    $region38: #{_forward_impl.1} parent=1 // pred_check
      _
    $region39: #{_forward_impl.1} parent=1 // pred_check_branch
      %107 = sbr.rel (0) target = $region41
    $region40: #{_forward_impl.1} parent=1 // pred_region
      %109 = vsyncadd [#allocation12], 0
      %s110 = sshll.u32 %s9, 4
      %s111 = int_to_ptr.hbm [resolvable:$true] %s110
      %s112 = sshll.u32 [#allocation13], 4
      %s113 = int_to_ptr.vmem [resolvable:$true] %s112
      %118 = dma.hbm_to_vmem [thread:$0]  %s111, 1024, %s113, [#allocation12], 64, 64, 4
    $region41: #{_forward_impl.1} parent=1 // pred_fallthru
      _
    // Predicated region
    $region42: #{_forward_impl.1} parent=1 // pred_check
      _
    $region43: #{_forward_impl.1} parent=1 // pred_check_branch
      %120 = sbr.rel (0) target = $region45
    $region44: #{_forward_impl.1} parent=1 // pred_region
      %122 = vsyncadd [#allocation15], 0
      %s123 = sshll.u32 %s10, 4
      %s124 = int_to_ptr.hbm [resolvable:$true] %s123
      %s125 = sshll.u32 [#allocation14], 4
      %s126 = int_to_ptr.vmem [resolvable:$true] %s125
      %131 = dma.hbm_to_vmem [thread:$0]  %s124, 1024, %s126, [#allocation15], 64, 64, 4
    $region45: #{_forward_impl.1} parent=1 // pred_fallthru
      _
    // Predicated region
    $region46: #{_forward_impl.1} parent=1 // pred_check
      _
    $region47: #{_forward_impl.1} parent=1 // pred_check_branch
      %133 = sbr.rel (0) target = $region49
    $region48: #{_forward_impl.1} parent=1 // pred_region
      %135 = dma.done [#allocation3], 3072
    $region49: #{_forward_impl.1} parent=1 // pred_fallthru
      _
    // Predicated region
    $region50: #{_forward_impl.1} parent=1 // pred_check
      _
    $region51: #{_forward_impl.1} parent=1 // pred_check_branch
      %137 = sbr.rel (0) target = $region53
    $region52: #{_forward_impl.1} parent=1 // pred_region
      %139 = dma.done [#allocation6], 1024
    $region53: #{_forward_impl.1} parent=1 // pred_fallthru
      _
    // Predicated region
    $region54: #{_forward_impl.1} parent=1 // pred_check
      _
    $region55: #{_forward_impl.1} parent=1 // pred_check_branch
      %141 = sbr.rel (0) target = $region57
    $region56: #{_forward_impl.1} parent=1 // pred_region
      %143 = dma.done [#allocation6], 3072
    $region57: #{_forward_impl.1} parent=1 // pred_fallthru
      _
    // Predicated region
    $region58: #{_forward_impl.1} parent=1 // pred_check
      _
    $region59: #{_forward_impl.1} parent=1 // pred_check_branch
      %145 = sbr.rel (0) target = $region61
    $region60: #{_forward_impl.1} parent=1 // pred_region
      %147 = dma.done [#allocation9], 1024
    $region61: #{_forward_impl.1} parent=1 // pred_fallthru
      _
    // Predicated region
    $region62: #{_forward_impl.1} parent=1 // pred_check
      _
    $region63: #{_forward_impl.1} parent=1 // pred_check_branch
      %149 = sbr.rel (0) target = $region65
    $region64: #{_forward_impl.1} parent=1 // pred_region
      %151 = dma.done [#allocation9], 1024
    $region65: #{_forward_impl.1} parent=1 // pred_fallthru
      _
    // Predicated region
    $region66: #{_forward_impl.1} parent=1 // pred_check
      _
    $region67: #{_forward_impl.1} parent=1 // pred_check_branch
      %153 = sbr.rel (0) target = $region69
    $region68: #{_forward_impl.1} parent=1 // pred_region
      %155 = dma.done [#allocation12], 3072
    $region69: #{_forward_impl.1} parent=1 // pred_fallthru
      _
    // Predicated region
    $region70: #{_forward_impl.1} parent=1 // pred_check
      _
    $region71: #{_forward_impl.1} parent=1 // pred_check_branch
      %157 = sbr.rel (0) target = $region73
    $region72: #{_forward_impl.1} parent=1 // pred_region
      %159 = dma.done [#allocation12], 1024
    $region73: #{_forward_impl.1} parent=1 // pred_fallthru
      _
    // Predicated region
    $region74: #{_forward_impl.1} parent=1 // pred_check
      _
    $region75: #{_forward_impl.1} parent=1 // pred_check_branch
      %161 = sbr.rel (0) target = $region77
    $region76: #{_forward_impl.1} parent=1 // pred_region
      %163 = dma.done [#allocation15], 1024
    $region77: #{_forward_impl.1} parent=1 // pred_fallthru
      _
    %v165 = vld [vmem:[%s0] sm:$0xf]
    %v166 = vld [vmem:[%s0 + $0x4] sm:$0xf]
    %v167 = vld [vmem:[%s2] sm:$0xf]
    %v168 = vld [vmem:[%s2 + $0x4] sm:$0xf]
    %v169 = vld [vmem:[%s2 + $0x8] sm:$0xf]
    %v170 = vld [vmem:[%s2 + $0xc] sm:$0xf]
    %v171 = vld [vmem:[%s2 + $0x10] sm:$0xf]
    %v172 = vld [vmem:[%s2 + $0x14] sm:$0xf]
    %v173 = vld [vmem:[%s2 + $0x18] sm:$0xf]
    %v174 = vld [vmem:[%s2 + $0x1c] sm:$0xf]
    %v175 = vld [vmem:[%s2 + $0x20] sm:$0xf]
    %v176 = vld [vmem:[%s2 + $0x24] sm:$0xf]
    %v177 = vld [vmem:[%s2 + $0x28] sm:$0xf]
    %v178 = vld [vmem:[%s2 + $0x2c] sm:$0xf]
    %v179 = vld [vmem:[%s2 + $0x30] sm:$0xf]
    %v180 = vld [vmem:[%s2 + $0x34] sm:$0xf]
    %v181 = vld [vmem:[%s2 + $0x38] sm:$0xf]
    %v182 = vld [vmem:[%s2 + $0x3c] sm:$0xf]
    %v185 = vunpack.c.l.b16 %v165
    %v186 = vunpack.c.l.b16 %v166
    %v187 = vpack.c.b16 %v186, %v185
    %v205 = vunpack.c.l.b16 %v167
    %v206 = vunpack.c.l.b16 %v168
    %v207 = vunpack.c.l.b16 %v169
    %v208 = vunpack.c.l.b16 %v170
    %v209 = vunpack.c.l.b16 %v171
    %v210 = vunpack.c.l.b16 %v172
    %v211 = vunpack.c.l.b16 %v173
    %v212 = vunpack.c.l.b16 %v174
    %v213 = vunpack.c.l.b16 %v175
    %v214 = vunpack.c.l.b16 %v176
    %v215 = vunpack.c.l.b16 %v177
    %v216 = vunpack.c.l.b16 %v178
    %v217 = vunpack.c.l.b16 %v179
    %v218 = vunpack.c.l.b16 %v180
    %v219 = vunpack.c.l.b16 %v181
    %v220 = vunpack.c.l.b16 %v182
    %v221 = vpack.c.b16 %v206, %v205
    %v222 = vpack.c.b16 %v208, %v207
    %v223 = vpack.c.b16 %v210, %v209
    %v224 = vpack.c.b16 %v212, %v211
    %v225 = vpack.c.b16 %v214, %v213
    %v226 = vpack.c.b16 %v216, %v215
    %v227 = vpack.c.b16 %v218, %v217
    %v228 = vpack.c.b16 %v220, %v219
    %237 = vmatpush.bf16.msra.mxu0 %v228
    %238 = vmatpush.bf16.msra.mxu0 %v227
    %239 = vmatpush.bf16.msra.mxu0 %v226
    %240 = vmatpush.bf16.msra.mxu0 %v225
    %241 = vmatpush.bf16.msra.mxu0 %v224
    %242 = vmatpush.bf16.msra.mxu0 %v223
    %243 = vmatpush.bf16.msra.mxu0 %v222
    %244 = vmatpush.bf16.msra.mxu0 %v221
    %245 = vmatmul.bf16.gmra.mxu0 %v187
    %v246 = vpop.f32.mrf.mxu0
    %v247 = vadd.f32 0.0, %v246
    %v248 = vpop.f32.mrf.mxu0
    %v249 = vadd.f32 0.0, %v248
    %250 = vdwg.mxu0
    %v251 = vmax.f32 %v247, 0.0
    %v252 = vmax.f32 %v249, 0.0
    %v253 = vpack.c.bf16 %v252, %v251
    %v254 = vld [vmem:[#allocation5] sm:$0xf]
    %v255 = vld [vmem:[#allocation5 + $0x4] sm:$0xf]
    %v256 = vld [vmem:[#allocation5 + $0x8] sm:$0xf]
    %v257 = vld [vmem:[#allocation5 + $0xc] sm:$0xf]
    %v258 = vld [vmem:[#allocation5 + $0x10] sm:$0xf]
    %v259 = vld [vmem:[#allocation5 + $0x14] sm:$0xf]
    %v260 = vld [vmem:[#allocation5 + $0x18] sm:$0xf]
    %v261 = vld [vmem:[#allocation5 + $0x1c] sm:$0xf]
    %v262 = vld [vmem:[#allocation5 + $0x20] sm:$0xf]
    %v263 = vld [vmem:[#allocation5 + $0x24] sm:$0xf]
    %v264 = vld [vmem:[#allocation5 + $0x28] sm:$0xf]
    %v265 = vld [vmem:[#allocation5 + $0x2c] sm:$0xf]
    %v266 = vld [vmem:[#allocation5 + $0x30] sm:$0xf]
    %v267 = vld [vmem:[#allocation5 + $0x34] sm:$0xf]
    %v268 = vld [vmem:[#allocation5 + $0x38] sm:$0xf]
    %v269 = vld [vmem:[#allocation5 + $0x3c] sm:$0xf]
    %v270 = vld [vmem:[#allocation2] sm:$0xf]
    %v271 = vld [vmem:[#allocation2 + $0x4] sm:$0xf]
    %v272 = vld [vmem:[#allocation2 + $0x8] sm:$0xf]
    %v273 = vld [vmem:[#allocation2 + $0xc] sm:$0xf]
    %v274 = vld [vmem:[#allocation2 + $0x10] sm:$0xf]
    %v275 = vld [vmem:[#allocation2 + $0x14] sm:$0xf]
    %v276 = vld [vmem:[#allocation2 + $0x18] sm:$0xf]
    %v277 = vld [vmem:[#allocation2 + $0x1c] sm:$0xf]
    %v278 = vld [vmem:[#allocation2 + $0x20] sm:$0xf]
    %v279 = vld [vmem:[#allocation2 + $0x24] sm:$0xf]
    %v280 = vld [vmem:[#allocation2 + $0x28] sm:$0xf]
    %v281 = vld [vmem:[#allocation2 + $0x2c] sm:$0xf]
    %v282 = vld [vmem:[#allocation2 + $0x30] sm:$0xf]
    %v283 = vld [vmem:[#allocation2 + $0x34] sm:$0xf]
    %v284 = vld [vmem:[#allocation2 + $0x38] sm:$0xf]
    %v285 = vld [vmem:[#allocation2 + $0x3c] sm:$0xf]
    %v302 = vunpack.c.l.b16 %v270
    %v303 = vunpack.c.l.b16 %v271
    %v304 = vunpack.c.l.b16 %v272
    %v305 = vunpack.c.l.b16 %v273
    %v306 = vunpack.c.l.b16 %v274
    %v307 = vunpack.c.l.b16 %v275
    %v308 = vunpack.c.l.b16 %v276
    %v309 = vunpack.c.l.b16 %v277
    %v310 = vunpack.c.l.b16 %v278
    %v311 = vunpack.c.l.b16 %v279
    %v312 = vunpack.c.l.b16 %v280
    %v313 = vunpack.c.l.b16 %v281
    %v314 = vunpack.c.l.b16 %v282
    %v315 = vunpack.c.l.b16 %v283
    %v316 = vunpack.c.l.b16 %v284
    %v317 = vunpack.c.l.b16 %v285
    %v318 = vpack.c.b16 %v303, %v302
    %v319 = vpack.c.b16 %v305, %v304
    %v320 = vpack.c.b16 %v307, %v306
    %v321 = vpack.c.b16 %v309, %v308
    %v322 = vpack.c.b16 %v311, %v310
    %v323 = vpack.c.b16 %v313, %v312
    %v324 = vpack.c.b16 %v315, %v314
    %v325 = vpack.c.b16 %v317, %v316
    %334 = vmatpush.bf16.msra.mxu0 %v325
    %335 = vmatpush.bf16.msra.mxu0 %v324
    %336 = vmatpush.bf16.msra.mxu0 %v323
    %337 = vmatpush.bf16.msra.mxu0 %v322
    %338 = vmatpush.bf16.msra.mxu0 %v321
    %339 = vmatpush.bf16.msra.mxu0 %v320
    %340 = vmatpush.bf16.msra.mxu0 %v319
    %341 = vmatpush.bf16.msra.mxu0 %v318
    %342 = vmatmul.bf16.gmra.mxu0 %v253
    %v343 = vpop.f32.mrf.mxu0
    %v344 = vadd.f32 0.0, %v343
    %v345 = vpop.f32.mrf.mxu0
    %v346 = vadd.f32 0.0, %v345
    %347 = vdwg.mxu0
    %v348 = vpack.c.bf16 %v346, %v344
    %v349 = vld [vmem:[%s1] sm:$0xf]
    %v350 = vld [vmem:[%s1 + $0x4] sm:$0xf]
    %v353 = vunpack.c.l.b16 %v349
    %v354 = vunpack.c.l.b16 %v350
    %v355 = vpack.c.b16 %v354, %v353
    %vm356 = vcmask 130048
    %v358 = vsel %vm356, %v355, 0
    %360 = vmatpush.bf16.msra.mxu0 0
    %361 = vmatpush.bf16.msra.mxu0 0
    %362 = vmatpush.bf16.msra.mxu0 0
    %363 = vmatpush.bf16.msra.mxu0 0
    %364 = vmatpush.bf16.msra.mxu0 0
    %365 = vmatpush.bf16.msra.mxu0 0
    %366 = vmatpush.bf16.msra.mxu0 0
    %367 = vmatpush.bf16.msra.mxu0 %v348
    %368 = vmatmul.bf16.gmra.mxu0 %v358
    %v369 = vpop.f32.mrf.mxu0
    %v370 = vadd.f32 0.0, %v369
    %v371 = vpop.f32.mrf.mxu0
    %v372 = vadd.f32 0.0, %v371
    %373 = vdwg.mxu0
    %v390 = vunpack.c.l.b16 %v254
    %v391 = vunpack.c.l.b16 %v255
    %v392 = vunpack.c.l.b16 %v256
    %v393 = vunpack.c.l.b16 %v257
    %v394 = vunpack.c.l.b16 %v258
    %v395 = vunpack.c.l.b16 %v259
    %v396 = vunpack.c.l.b16 %v260
    %v397 = vunpack.c.l.b16 %v261
    %v398 = vunpack.c.l.b16 %v262
    %v399 = vunpack.c.l.b16 %v263
    %v400 = vunpack.c.l.b16 %v264
    %v401 = vunpack.c.l.b16 %v265
    %v402 = vunpack.c.l.b16 %v266
    %v403 = vunpack.c.l.b16 %v267
    %v404 = vunpack.c.l.b16 %v268
    %v405 = vunpack.c.l.b16 %v269
    %v406 = vpack.c.b16 %v391, %v390
    %v407 = vpack.c.b16 %v393, %v392
    %v408 = vpack.c.b16 %v395, %v394
    %v409 = vpack.c.b16 %v397, %v396
    %v410 = vpack.c.b16 %v399, %v398
    %v411 = vpack.c.b16 %v401, %v400
    %v412 = vpack.c.b16 %v403, %v402
    %v413 = vpack.c.b16 %v405, %v404
    %422 = vmatpush.bf16.msra.mxu0 %v413
    %423 = vmatpush.bf16.msra.mxu0 %v412
    %424 = vmatpush.bf16.msra.mxu0 %v411
    %425 = vmatpush.bf16.msra.mxu0 %v410
    %426 = vmatpush.bf16.msra.mxu0 %v409
    %427 = vmatpush.bf16.msra.mxu0 %v408
    %428 = vmatpush.bf16.msra.mxu0 %v407
    %429 = vmatpush.bf16.msra.mxu0 %v406
    %430 = vmatmul.bf16.gmra.mxu0 %v253
    %v431 = vpop.f32.mrf.mxu0
    %v432 = vadd.f32 %v370, %v431
    %v433 = vpop.f32.mrf.mxu0
    %v434 = vadd.f32 %v372, %v433
    %435 = vdwg.mxu0
    %s436 = scalar_lea.vmem [#allocation2], 64
    %v437 = vld [vmem:[%s436] sm:$0xf]
    %v438 = vld [vmem:[%s436 + $0x4] sm:$0xf]
    %v439 = vld [vmem:[%s436 + $0x8] sm:$0xf]
    %v440 = vld [vmem:[%s436 + $0xc] sm:$0xf]
    %v441 = vld [vmem:[%s436 + $0x10] sm:$0xf]
    %v442 = vld [vmem:[%s436 + $0x14] sm:$0xf]
    %v443 = vld [vmem:[%s436 + $0x18] sm:$0xf]
    %v444 = vld [vmem:[%s436 + $0x1c] sm:$0xf]
    %v445 = vld [vmem:[%s436 + $0x20] sm:$0xf]
    %v446 = vld [vmem:[%s436 + $0x24] sm:$0xf]
    %v447 = vld [vmem:[%s436 + $0x28] sm:$0xf]
    %v448 = vld [vmem:[%s436 + $0x2c] sm:$0xf]
    %v449 = vld [vmem:[%s436 + $0x30] sm:$0xf]
    %v450 = vld [vmem:[%s436 + $0x34] sm:$0xf]
    %v451 = vld [vmem:[%s436 + $0x38] sm:$0xf]
    %v452 = vld [vmem:[%s436 + $0x3c] sm:$0xf]
    %v469 = vunpack.c.l.b16 %v437
    %v470 = vunpack.c.l.b16 %v438
    %v471 = vunpack.c.l.b16 %v439
    %v472 = vunpack.c.l.b16 %v440
    %v473 = vunpack.c.l.b16 %v441
    %v474 = vunpack.c.l.b16 %v442
    %v475 = vunpack.c.l.b16 %v443
    %v476 = vunpack.c.l.b16 %v444
    %v477 = vunpack.c.l.b16 %v445
    %v478 = vunpack.c.l.b16 %v446
    %v479 = vunpack.c.l.b16 %v447
    %v480 = vunpack.c.l.b16 %v448
    %v481 = vunpack.c.l.b16 %v449
    %v482 = vunpack.c.l.b16 %v450
    %v483 = vunpack.c.l.b16 %v451
    %v484 = vunpack.c.l.b16 %v452
    %v485 = vpack.c.b16 %v470, %v469
    %v486 = vpack.c.b16 %v472, %v471
    %v487 = vpack.c.b16 %v474, %v473
    %v488 = vpack.c.b16 %v476, %v475
    %v489 = vpack.c.b16 %v478, %v477
    %v490 = vpack.c.b16 %v480, %v479
    %v491 = vpack.c.b16 %v482, %v481
    %v492 = vpack.c.b16 %v484, %v483
    %501 = vmatpush.bf16.msra.mxu0 %v492
    %502 = vmatpush.bf16.msra.mxu0 %v491
    %503 = vmatpush.bf16.msra.mxu0 %v490
    %504 = vmatpush.bf16.msra.mxu0 %v489
    %505 = vmatpush.bf16.msra.mxu0 %v488
    %506 = vmatpush.bf16.msra.mxu0 %v487
    %507 = vmatpush.bf16.msra.mxu0 %v486
    %508 = vmatpush.bf16.msra.mxu0 %v485
    %509 = vmatmul.bf16.gmra.mxu0 %v253
    %v510 = vpop.f32.mrf.mxu0
    %v511 = vadd.f32 0.0, %v510
    %v512 = vpop.f32.mrf.mxu0
    %v513 = vadd.f32 0.0, %v512
    %514 = vdwg.mxu0
    %v515 = vpack.c.bf16 %v513, %v511
    %s516 = scalar_lea.vmem %s1, 8
    %v517 = vld [vmem:[%s516] sm:$0xf]
    %v518 = vld [vmem:[%s516 + $0x4] sm:$0xf]
    %v521 = vunpack.c.l.b16 %v517
    %v522 = vunpack.c.l.b16 %v518
    %v523 = vpack.c.b16 %v522, %v521
    %v525 = vsel %vm356, %v523, 0
    %527 = vmatpush.bf16.msra.mxu0 0
    %528 = vmatpush.bf16.msra.mxu0 0
    %529 = vmatpush.bf16.msra.mxu0 0
    %530 = vmatpush.bf16.msra.mxu0 0
    %531 = vmatpush.bf16.msra.mxu0 0
    %532 = vmatpush.bf16.msra.mxu0 0
    %533 = vmatpush.bf16.msra.mxu0 0
    %534 = vmatpush.bf16.msra.mxu0 %v515
    %535 = vmatmul.bf16.gmra.mxu0 %v525
    %v536 = vpop.f32.mrf.mxu0
    %v537 = vadd.f32 0.0, %v536
    %v538 = vpop.f32.mrf.mxu0
    %v539 = vadd.f32 0.0, %v538
    %540 = vdwg.mxu0
    %v541 = vadd.f32 %v432, %v537
    %v542 = vadd.f32 %v434, %v539
    %s543 = scalar_lea.vmem [#allocation2], 128
    %v544 = vld [vmem:[%s543] sm:$0xf]
    %v545 = vld [vmem:[%s543 + $0x4] sm:$0xf]
    %v546 = vld [vmem:[%s543 + $0x8] sm:$0xf]
    %v547 = vld [vmem:[%s543 + $0xc] sm:$0xf]
    %v548 = vld [vmem:[%s543 + $0x10] sm:$0xf]
    %v549 = vld [vmem:[%s543 + $0x14] sm:$0xf]
    %v550 = vld [vmem:[%s543 + $0x18] sm:$0xf]
    %v551 = vld [vmem:[%s543 + $0x1c] sm:$0xf]
    %v552 = vld [vmem:[%s543 + $0x20] sm:$0xf]
    %v553 = vld [vmem:[%s543 + $0x24] sm:$0xf]
    %v554 = vld [vmem:[%s543 + $0x28] sm:$0xf]
    %v555 = vld [vmem:[%s543 + $0x2c] sm:$0xf]
    %v556 = vld [vmem:[%s543 + $0x30] sm:$0xf]
    %v557 = vld [vmem:[%s543 + $0x34] sm:$0xf]
    %v558 = vld [vmem:[%s543 + $0x38] sm:$0xf]
    %v559 = vld [vmem:[%s543 + $0x3c] sm:$0xf]
    %v576 = vunpack.c.l.b16 %v544
    %v577 = vunpack.c.l.b16 %v545
    %v578 = vunpack.c.l.b16 %v546
    %v579 = vunpack.c.l.b16 %v547
    %v580 = vunpack.c.l.b16 %v548
    %v581 = vunpack.c.l.b16 %v549
    %v582 = vunpack.c.l.b16 %v550
    %v583 = vunpack.c.l.b16 %v551
    %v584 = vunpack.c.l.b16 %v552
    %v585 = vunpack.c.l.b16 %v553
    %v586 = vunpack.c.l.b16 %v554
    %v587 = vunpack.c.l.b16 %v555
    %v588 = vunpack.c.l.b16 %v556
    %v589 = vunpack.c.l.b16 %v557
    %v590 = vunpack.c.l.b16 %v558
    %v591 = vunpack.c.l.b16 %v559
    %v592 = vpack.c.b16 %v577, %v576
    %v593 = vpack.c.b16 %v579, %v578
    %v594 = vpack.c.b16 %v581, %v580
    %v595 = vpack.c.b16 %v583, %v582
    %v596 = vpack.c.b16 %v585, %v584
    %v597 = vpack.c.b16 %v587, %v586
    %v598 = vpack.c.b16 %v589, %v588
    %v599 = vpack.c.b16 %v591, %v590
    %608 = vmatpush.bf16.msra.mxu0 %v599
    %609 = vmatpush.bf16.msra.mxu0 %v598
    %610 = vmatpush.bf16.msra.mxu0 %v597
    %611 = vmatpush.bf16.msra.mxu0 %v596
    %612 = vmatpush.bf16.msra.mxu0 %v595
    %613 = vmatpush.bf16.msra.mxu0 %v594
    %614 = vmatpush.bf16.msra.mxu0 %v593
    %615 = vmatpush.bf16.msra.mxu0 %v592
    %616 = vmatmul.bf16.gmra.mxu0 %v253
    %v617 = vpop.f32.mrf.mxu0
    %v618 = vadd.f32 0.0, %v617
    %v619 = vpop.f32.mrf.mxu0
    %v620 = vadd.f32 0.0, %v619
    %621 = vdwg.mxu0
    %v622 = vpack.c.bf16 %v620, %v618
    %s623 = scalar_lea.vmem %s1, 16
    %v624 = vld [vmem:[%s623] sm:$0xf]
    %v625 = vld [vmem:[%s623 + $0x4] sm:$0xf]
    %v628 = vunpack.c.l.b16 %v624
    %v629 = vunpack.c.l.b16 %v625
    %v630 = vpack.c.b16 %v629, %v628
    %v632 = vsel %vm356, %v630, 0
    %634 = vmatpush.bf16.msra.mxu0 0
    %635 = vmatpush.bf16.msra.mxu0 0
    %636 = vmatpush.bf16.msra.mxu0 0
    %637 = vmatpush.bf16.msra.mxu0 0
    %638 = vmatpush.bf16.msra.mxu0 0
    %639 = vmatpush.bf16.msra.mxu0 0
    %640 = vmatpush.bf16.msra.mxu0 0
    %641 = vmatpush.bf16.msra.mxu0 %v622
    %642 = vmatmul.bf16.gmra.mxu0 %v632
    %v643 = vpop.f32.mrf.mxu0
    %v644 = vadd.f32 0.0, %v643
    %v645 = vpop.f32.mrf.mxu0
    %v646 = vadd.f32 0.0, %v645
    %647 = vdwg.mxu0
    %v648 = vadd.f32 %v541, %v644
    %v649 = vadd.f32 %v542, %v646
    %v650 = vmax.f32 %v648, 0.0
    %v651 = vmax.f32 %v649, 0.0
    %v652 = vpack.c.bf16 %v651, %v650
    %v653 = vld [vmem:[#allocation8] sm:$0xf]
    %v654 = vld [vmem:[#allocation8 + $0x4] sm:$0xf]
    %v655 = vld [vmem:[#allocation8 + $0x8] sm:$0xf]
    %v656 = vld [vmem:[#allocation8 + $0xc] sm:$0xf]
    %v657 = vld [vmem:[#allocation8 + $0x10] sm:$0xf]
    %v658 = vld [vmem:[#allocation8 + $0x14] sm:$0xf]
    %v659 = vld [vmem:[#allocation8 + $0x18] sm:$0xf]
    %v660 = vld [vmem:[#allocation8 + $0x1c] sm:$0xf]
    %v661 = vld [vmem:[#allocation8 + $0x20] sm:$0xf]
    %v662 = vld [vmem:[#allocation8 + $0x24] sm:$0xf]
    %v663 = vld [vmem:[#allocation8 + $0x28] sm:$0xf]
    %v664 = vld [vmem:[#allocation8 + $0x2c] sm:$0xf]
    %v665 = vld [vmem:[#allocation8 + $0x30] sm:$0xf]
    %v666 = vld [vmem:[#allocation8 + $0x34] sm:$0xf]
    %v667 = vld [vmem:[#allocation8 + $0x38] sm:$0xf]
    %v668 = vld [vmem:[#allocation8 + $0x3c] sm:$0xf]
    %v669 = vld [vmem:[#allocation7] sm:$0xf]
    %v670 = vld [vmem:[#allocation7 + $0x4] sm:$0xf]
    %v671 = vld [vmem:[#allocation7 + $0x8] sm:$0xf]
    %v672 = vld [vmem:[#allocation7 + $0xc] sm:$0xf]
    %v673 = vld [vmem:[#allocation7 + $0x10] sm:$0xf]
    %v674 = vld [vmem:[#allocation7 + $0x14] sm:$0xf]
    %v675 = vld [vmem:[#allocation7 + $0x18] sm:$0xf]
    %v676 = vld [vmem:[#allocation7 + $0x1c] sm:$0xf]
    %v677 = vld [vmem:[#allocation7 + $0x20] sm:$0xf]
    %v678 = vld [vmem:[#allocation7 + $0x24] sm:$0xf]
    %v679 = vld [vmem:[#allocation7 + $0x28] sm:$0xf]
    %v680 = vld [vmem:[#allocation7 + $0x2c] sm:$0xf]
    %v681 = vld [vmem:[#allocation7 + $0x30] sm:$0xf]
    %v682 = vld [vmem:[#allocation7 + $0x34] sm:$0xf]
    %v683 = vld [vmem:[#allocation7 + $0x38] sm:$0xf]
    %v684 = vld [vmem:[#allocation7 + $0x3c] sm:$0xf]
    %v701 = vunpack.c.l.b16 %v669
    %v702 = vunpack.c.l.b16 %v670
    %v703 = vunpack.c.l.b16 %v671
    %v704 = vunpack.c.l.b16 %v672
    %v705 = vunpack.c.l.b16 %v673
    %v706 = vunpack.c.l.b16 %v674
    %v707 = vunpack.c.l.b16 %v675
    %v708 = vunpack.c.l.b16 %v676
    %v709 = vunpack.c.l.b16 %v677
    %v710 = vunpack.c.l.b16 %v678
    %v711 = vunpack.c.l.b16 %v679
    %v712 = vunpack.c.l.b16 %v680
    %v713 = vunpack.c.l.b16 %v681
    %v714 = vunpack.c.l.b16 %v682
    %v715 = vunpack.c.l.b16 %v683
    %v716 = vunpack.c.l.b16 %v684
    %v717 = vpack.c.b16 %v702, %v701
    %v718 = vpack.c.b16 %v704, %v703
    %v719 = vpack.c.b16 %v706, %v705
    %v720 = vpack.c.b16 %v708, %v707
    %v721 = vpack.c.b16 %v710, %v709
    %v722 = vpack.c.b16 %v712, %v711
    %v723 = vpack.c.b16 %v714, %v713
    %v724 = vpack.c.b16 %v716, %v715
    %733 = vmatpush.bf16.msra.mxu0 %v724
    %734 = vmatpush.bf16.msra.mxu0 %v723
    %735 = vmatpush.bf16.msra.mxu0 %v722
    %736 = vmatpush.bf16.msra.mxu0 %v721
    %737 = vmatpush.bf16.msra.mxu0 %v720
    %738 = vmatpush.bf16.msra.mxu0 %v719
    %739 = vmatpush.bf16.msra.mxu0 %v718
    %740 = vmatpush.bf16.msra.mxu0 %v717
    %741 = vmatmul.bf16.gmra.mxu0 %v652
    %v742 = vpop.f32.mrf.mxu0
    %v743 = vadd.f32 0.0, %v742
    %v744 = vpop.f32.mrf.mxu0
    %v745 = vadd.f32 0.0, %v744
    %746 = vdwg.mxu0
    %v747 = vpack.c.bf16 %v745, %v743
    %748 = vmatpush.bf16.msra.mxu0 0
    %749 = vmatpush.bf16.msra.mxu0 0
    %750 = vmatpush.bf16.msra.mxu0 0
    %751 = vmatpush.bf16.msra.mxu0 0
    %752 = vmatpush.bf16.msra.mxu0 0
    %753 = vmatpush.bf16.msra.mxu0 0
    %754 = vmatpush.bf16.msra.mxu0 0
    %755 = vmatpush.bf16.msra.mxu0 %v747
    %756 = vmatmul.bf16.gmra.mxu0 %v358
    %v757 = vpop.f32.mrf.mxu0
    %v758 = vadd.f32 0.0, %v757
    %v759 = vpop.f32.mrf.mxu0
    %v760 = vadd.f32 0.0, %v759
    %761 = vdwg.mxu0
    %v778 = vunpack.c.l.b16 %v653
    %v779 = vunpack.c.l.b16 %v654
    %v780 = vunpack.c.l.b16 %v655
    %v781 = vunpack.c.l.b16 %v656
    %v782 = vunpack.c.l.b16 %v657
    %v783 = vunpack.c.l.b16 %v658
    %v784 = vunpack.c.l.b16 %v659
    %v785 = vunpack.c.l.b16 %v660
    %v786 = vunpack.c.l.b16 %v661
    %v787 = vunpack.c.l.b16 %v662
    %v788 = vunpack.c.l.b16 %v663
    %v789 = vunpack.c.l.b16 %v664
    %v790 = vunpack.c.l.b16 %v665
    %v791 = vunpack.c.l.b16 %v666
    %v792 = vunpack.c.l.b16 %v667
    %v793 = vunpack.c.l.b16 %v668
    %v794 = vpack.c.b16 %v779, %v778
    %v795 = vpack.c.b16 %v781, %v780
    %v796 = vpack.c.b16 %v783, %v782
    %v797 = vpack.c.b16 %v785, %v784
    %v798 = vpack.c.b16 %v787, %v786
    %v799 = vpack.c.b16 %v789, %v788
    %v800 = vpack.c.b16 %v791, %v790
    %v801 = vpack.c.b16 %v793, %v792
    %810 = vmatpush.bf16.msra.mxu0 %v801
    %811 = vmatpush.bf16.msra.mxu0 %v800
    %812 = vmatpush.bf16.msra.mxu0 %v799
    %813 = vmatpush.bf16.msra.mxu0 %v798
    %814 = vmatpush.bf16.msra.mxu0 %v797
    %815 = vmatpush.bf16.msra.mxu0 %v796
    %816 = vmatpush.bf16.msra.mxu0 %v795
    %817 = vmatpush.bf16.msra.mxu0 %v794
    %818 = vmatmul.bf16.gmra.mxu0 %v652
    %v819 = vpop.f32.mrf.mxu0
    %v820 = vadd.f32 %v758, %v819
    %v821 = vpop.f32.mrf.mxu0
    %v822 = vadd.f32 %v760, %v821
    %823 = vdwg.mxu0
    %s824 = scalar_lea.vmem [#allocation7], 64
    %v825 = vld [vmem:[%s824] sm:$0xf]
    %v826 = vld [vmem:[%s824 + $0x4] sm:$0xf]
    %v827 = vld [vmem:[%s824 + $0x8] sm:$0xf]
    %v828 = vld [vmem:[%s824 + $0xc] sm:$0xf]
    %v829 = vld [vmem:[%s824 + $0x10] sm:$0xf]
    %v830 = vld [vmem:[%s824 + $0x14] sm:$0xf]
    %v831 = vld [vmem:[%s824 + $0x18] sm:$0xf]
    %v832 = vld [vmem:[%s824 + $0x1c] sm:$0xf]
    %v833 = vld [vmem:[%s824 + $0x20] sm:$0xf]
    %v834 = vld [vmem:[%s824 + $0x24] sm:$0xf]
    %v835 = vld [vmem:[%s824 + $0x28] sm:$0xf]
    %v836 = vld [vmem:[%s824 + $0x2c] sm:$0xf]
    %v837 = vld [vmem:[%s824 + $0x30] sm:$0xf]
    %v838 = vld [vmem:[%s824 + $0x34] sm:$0xf]
    %v839 = vld [vmem:[%s824 + $0x38] sm:$0xf]
    %v840 = vld [vmem:[%s824 + $0x3c] sm:$0xf]
    %v857 = vunpack.c.l.b16 %v825
    %v858 = vunpack.c.l.b16 %v826
    %v859 = vunpack.c.l.b16 %v827
    %v860 = vunpack.c.l.b16 %v828
    %v861 = vunpack.c.l.b16 %v829
    %v862 = vunpack.c.l.b16 %v830
    %v863 = vunpack.c.l.b16 %v831
    %v864 = vunpack.c.l.b16 %v832
    %v865 = vunpack.c.l.b16 %v833
    %v866 = vunpack.c.l.b16 %v834
    %v867 = vunpack.c.l.b16 %v835
    %v868 = vunpack.c.l.b16 %v836
    %v869 = vunpack.c.l.b16 %v837
    %v870 = vunpack.c.l.b16 %v838
    %v871 = vunpack.c.l.b16 %v839
    %v872 = vunpack.c.l.b16 %v840
    %v873 = vpack.c.b16 %v858, %v857
    %v874 = vpack.c.b16 %v860, %v859
    %v875 = vpack.c.b16 %v862, %v861
    %v876 = vpack.c.b16 %v864, %v863
    %v877 = vpack.c.b16 %v866, %v865
    %v878 = vpack.c.b16 %v868, %v867
    %v879 = vpack.c.b16 %v870, %v869
    %v880 = vpack.c.b16 %v872, %v871
    %889 = vmatpush.bf16.msra.mxu0 %v880
    %890 = vmatpush.bf16.msra.mxu0 %v879
    %891 = vmatpush.bf16.msra.mxu0 %v878
    %892 = vmatpush.bf16.msra.mxu0 %v877
    %893 = vmatpush.bf16.msra.mxu0 %v876
    %894 = vmatpush.bf16.msra.mxu0 %v875
    %895 = vmatpush.bf16.msra.mxu0 %v874
    %896 = vmatpush.bf16.msra.mxu0 %v873
    %897 = vmatmul.bf16.gmra.mxu0 %v652
    %v898 = vpop.f32.mrf.mxu0
    %v899 = vadd.f32 0.0, %v898
    %v900 = vpop.f32.mrf.mxu0
    %v901 = vadd.f32 0.0, %v900
    %902 = vdwg.mxu0
    %v903 = vpack.c.bf16 %v901, %v899
    %904 = vmatpush.bf16.msra.mxu0 0
    %905 = vmatpush.bf16.msra.mxu0 0
    %906 = vmatpush.bf16.msra.mxu0 0
    %907 = vmatpush.bf16.msra.mxu0 0
    %908 = vmatpush.bf16.msra.mxu0 0
    %909 = vmatpush.bf16.msra.mxu0 0
    %910 = vmatpush.bf16.msra.mxu0 0
    %911 = vmatpush.bf16.msra.mxu0 %v903
    %912 = vmatmul.bf16.gmra.mxu0 %v525
    %v913 = vpop.f32.mrf.mxu0
    %v914 = vadd.f32 0.0, %v913
    %v915 = vpop.f32.mrf.mxu0
    %v916 = vadd.f32 0.0, %v915
    %917 = vdwg.mxu0
    %v918 = vadd.f32 %v820, %v914
    %v919 = vadd.f32 %v822, %v916
    %s920 = scalar_lea.vmem [#allocation7], 128
    %v921 = vld [vmem:[%s920] sm:$0xf]
    %v922 = vld [vmem:[%s920 + $0x4] sm:$0xf]
    %v923 = vld [vmem:[%s920 + $0x8] sm:$0xf]
    %v924 = vld [vmem:[%s920 + $0xc] sm:$0xf]
    %v925 = vld [vmem:[%s920 + $0x10] sm:$0xf]
    %v926 = vld [vmem:[%s920 + $0x14] sm:$0xf]
    %v927 = vld [vmem:[%s920 + $0x18] sm:$0xf]
    %v928 = vld [vmem:[%s920 + $0x1c] sm:$0xf]
    %v929 = vld [vmem:[%s920 + $0x20] sm:$0xf]
    %v930 = vld [vmem:[%s920 + $0x24] sm:$0xf]
    %v931 = vld [vmem:[%s920 + $0x28] sm:$0xf]
    %v932 = vld [vmem:[%s920 + $0x2c] sm:$0xf]
    %v933 = vld [vmem:[%s920 + $0x30] sm:$0xf]
    %v934 = vld [vmem:[%s920 + $0x34] sm:$0xf]
    %v935 = vld [vmem:[%s920 + $0x38] sm:$0xf]
    %v936 = vld [vmem:[%s920 + $0x3c] sm:$0xf]
    %v953 = vunpack.c.l.b16 %v921
    %v954 = vunpack.c.l.b16 %v922
    %v955 = vunpack.c.l.b16 %v923
    %v956 = vunpack.c.l.b16 %v924
    %v957 = vunpack.c.l.b16 %v925
    %v958 = vunpack.c.l.b16 %v926
    %v959 = vunpack.c.l.b16 %v927
    %v960 = vunpack.c.l.b16 %v928
    %v961 = vunpack.c.l.b16 %v929
    %v962 = vunpack.c.l.b16 %v930
    %v963 = vunpack.c.l.b16 %v931
    %v964 = vunpack.c.l.b16 %v932
    %v965 = vunpack.c.l.b16 %v933
    %v966 = vunpack.c.l.b16 %v934
    %v967 = vunpack.c.l.b16 %v935
    %v968 = vunpack.c.l.b16 %v936
    %v969 = vpack.c.b16 %v954, %v953
    %v970 = vpack.c.b16 %v956, %v955
    %v971 = vpack.c.b16 %v958, %v957
    %v972 = vpack.c.b16 %v960, %v959
    %v973 = vpack.c.b16 %v962, %v961
    %v974 = vpack.c.b16 %v964, %v963
    %v975 = vpack.c.b16 %v966, %v965
    %v976 = vpack.c.b16 %v968, %v967
    %985 = vmatpush.bf16.msra.mxu0 %v976
    %986 = vmatpush.bf16.msra.mxu0 %v975
    %987 = vmatpush.bf16.msra.mxu0 %v974
    %988 = vmatpush.bf16.msra.mxu0 %v973
    %989 = vmatpush.bf16.msra.mxu0 %v972
    %990 = vmatpush.bf16.msra.mxu0 %v971
    %991 = vmatpush.bf16.msra.mxu0 %v970
    %992 = vmatpush.bf16.msra.mxu0 %v969
    %993 = vmatmul.bf16.gmra.mxu0 %v652
    %v994 = vpop.f32.mrf.mxu0
    %v995 = vadd.f32 0.0, %v994
    %v996 = vpop.f32.mrf.mxu0
    %v997 = vadd.f32 0.0, %v996
    %998 = vdwg.mxu0
    %v999 = vpack.c.bf16 %v997, %v995
    %1000 = vmatpush.bf16.msra.mxu0 0
    %1001 = vmatpush.bf16.msra.mxu0 0
    %1002 = vmatpush.bf16.msra.mxu0 0
    %1003 = vmatpush.bf16.msra.mxu0 0
    %1004 = vmatpush.bf16.msra.mxu0 0
    %1005 = vmatpush.bf16.msra.mxu0 0
    %1006 = vmatpush.bf16.msra.mxu0 0
    %1007 = vmatpush.bf16.msra.mxu0 %v999
    %1008 = vmatmul.bf16.gmra.mxu0 %v632
    %v1009 = vpop.f32.mrf.mxu0
    %v1010 = vadd.f32 0.0, %v1009
    %v1011 = vpop.f32.mrf.mxu0
    %v1012 = vadd.f32 0.0, %v1011
    %1013 = vdwg.mxu0
    %v1014 = vadd.f32 %v918, %v1010
    %v1015 = vadd.f32 %v919, %v1012
    %v1016 = vld [vmem:[#allocation10] sm:$0xf]
    %v1017 = vld [vmem:[#allocation10 + $0x4] sm:$0xf]
    %v1018 = vld [vmem:[#allocation10 + $0x8] sm:$0xf]
    %v1019 = vld [vmem:[#allocation10 + $0xc] sm:$0xf]
    %v1020 = vld [vmem:[#allocation10 + $0x10] sm:$0xf]
    %v1021 = vld [vmem:[#allocation10 + $0x14] sm:$0xf]
    %v1022 = vld [vmem:[#allocation10 + $0x18] sm:$0xf]
    %v1023 = vld [vmem:[#allocation10 + $0x1c] sm:$0xf]
    %v1024 = vld [vmem:[#allocation10 + $0x20] sm:$0xf]
    %v1025 = vld [vmem:[#allocation10 + $0x24] sm:$0xf]
    %v1026 = vld [vmem:[#allocation10 + $0x28] sm:$0xf]
    %v1027 = vld [vmem:[#allocation10 + $0x2c] sm:$0xf]
    %v1028 = vld [vmem:[#allocation10 + $0x30] sm:$0xf]
    %v1029 = vld [vmem:[#allocation10 + $0x34] sm:$0xf]
    %v1030 = vld [vmem:[#allocation10 + $0x38] sm:$0xf]
    %v1031 = vld [vmem:[#allocation10 + $0x3c] sm:$0xf]
    %v1048 = vunpack.c.l.b16 %v1016
    %v1049 = vunpack.c.l.b16 %v1017
    %v1050 = vunpack.c.l.b16 %v1018
    %v1051 = vunpack.c.l.b16 %v1019
    %v1052 = vunpack.c.l.b16 %v1020
    %v1053 = vunpack.c.l.b16 %v1021
    %v1054 = vunpack.c.l.b16 %v1022
    %v1055 = vunpack.c.l.b16 %v1023
    %v1056 = vunpack.c.l.b16 %v1024
    %v1057 = vunpack.c.l.b16 %v1025
    %v1058 = vunpack.c.l.b16 %v1026
    %v1059 = vunpack.c.l.b16 %v1027
    %v1060 = vunpack.c.l.b16 %v1028
    %v1061 = vunpack.c.l.b16 %v1029
    %v1062 = vunpack.c.l.b16 %v1030
    %v1063 = vunpack.c.l.b16 %v1031
    %v1064 = vpack.c.b16 %v1049, %v1048
    %v1065 = vpack.c.b16 %v1051, %v1050
    %v1066 = vpack.c.b16 %v1053, %v1052
    %v1067 = vpack.c.b16 %v1055, %v1054
    %v1068 = vpack.c.b16 %v1057, %v1056
    %v1069 = vpack.c.b16 %v1059, %v1058
    %v1070 = vpack.c.b16 %v1061, %v1060
    %v1071 = vpack.c.b16 %v1063, %v1062
    %1080 = vmatpush.bf16.msra.mxu0 %v1071
    %1081 = vmatpush.bf16.msra.mxu0 %v1070
    %1082 = vmatpush.bf16.msra.mxu0 %v1069
    %1083 = vmatpush.bf16.msra.mxu0 %v1068
    %1084 = vmatpush.bf16.msra.mxu0 %v1067
    %1085 = vmatpush.bf16.msra.mxu0 %v1066
    %1086 = vmatpush.bf16.msra.mxu0 %v1065
    %1087 = vmatpush.bf16.msra.mxu0 %v1064
    %1088 = vmatmul.bf16.gmra.mxu0 %v652
    %v1089 = vpop.f32.mrf.mxu0
    %v1090 = vadd.f32 0.0, %v1089
    %v1091 = vpop.f32.mrf.mxu0
    %v1092 = vadd.f32 0.0, %v1091
    %1093 = vdwg.mxu0
    %v1094 = vadd.f32 %v1014, %v1090
    %v1095 = vadd.f32 %v1015, %v1092
    %v1096 = vmax.f32 %v1094, 0.0
    %v1097 = vmax.f32 %v1095, 0.0
    %v1098 = vpack.c.bf16 %v1097, %v1096
    %v1099 = vld [vmem:[#allocation13] sm:$0xf]
    %v1100 = vld [vmem:[#allocation13 + $0x4] sm:$0xf]
    %v1101 = vld [vmem:[#allocation13 + $0x8] sm:$0xf]
    %v1102 = vld [vmem:[#allocation13 + $0xc] sm:$0xf]
    %v1103 = vld [vmem:[#allocation13 + $0x10] sm:$0xf]
    %v1104 = vld [vmem:[#allocation13 + $0x14] sm:$0xf]
    %v1105 = vld [vmem:[#allocation13 + $0x18] sm:$0xf]
    %v1106 = vld [vmem:[#allocation13 + $0x1c] sm:$0xf]
    %v1107 = vld [vmem:[#allocation13 + $0x20] sm:$0xf]
    %v1108 = vld [vmem:[#allocation13 + $0x24] sm:$0xf]
    %v1109 = vld [vmem:[#allocation13 + $0x28] sm:$0xf]
    %v1110 = vld [vmem:[#allocation13 + $0x2c] sm:$0xf]
    %v1111 = vld [vmem:[#allocation13 + $0x30] sm:$0xf]
    %v1112 = vld [vmem:[#allocation13 + $0x34] sm:$0xf]
    %v1113 = vld [vmem:[#allocation13 + $0x38] sm:$0xf]
    %v1114 = vld [vmem:[#allocation13 + $0x3c] sm:$0xf]
    %v1115 = vld [vmem:[#allocation11] sm:$0xf]
    %v1116 = vld [vmem:[#allocation11 + $0x4] sm:$0xf]
    %v1117 = vld [vmem:[#allocation11 + $0x8] sm:$0xf]
    %v1118 = vld [vmem:[#allocation11 + $0xc] sm:$0xf]
    %v1119 = vld [vmem:[#allocation11 + $0x10] sm:$0xf]
    %v1120 = vld [vmem:[#allocation11 + $0x14] sm:$0xf]
    %v1121 = vld [vmem:[#allocation11 + $0x18] sm:$0xf]
    %v1122 = vld [vmem:[#allocation11 + $0x1c] sm:$0xf]
    %v1123 = vld [vmem:[#allocation11 + $0x20] sm:$0xf]
    %v1124 = vld [vmem:[#allocation11 + $0x24] sm:$0xf]
    %v1125 = vld [vmem:[#allocation11 + $0x28] sm:$0xf]
    %v1126 = vld [vmem:[#allocation11 + $0x2c] sm:$0xf]
    %v1127 = vld [vmem:[#allocation11 + $0x30] sm:$0xf]
    %v1128 = vld [vmem:[#allocation11 + $0x34] sm:$0xf]
    %v1129 = vld [vmem:[#allocation11 + $0x38] sm:$0xf]
    %v1130 = vld [vmem:[#allocation11 + $0x3c] sm:$0xf]
    %v1147 = vunpack.c.l.b16 %v1115
    %v1148 = vunpack.c.l.b16 %v1116
    %v1149 = vunpack.c.l.b16 %v1117
    %v1150 = vunpack.c.l.b16 %v1118
    %v1151 = vunpack.c.l.b16 %v1119
    %v1152 = vunpack.c.l.b16 %v1120
    %v1153 = vunpack.c.l.b16 %v1121
    %v1154 = vunpack.c.l.b16 %v1122
    %v1155 = vunpack.c.l.b16 %v1123
    %v1156 = vunpack.c.l.b16 %v1124
    %v1157 = vunpack.c.l.b16 %v1125
    %v1158 = vunpack.c.l.b16 %v1126
    %v1159 = vunpack.c.l.b16 %v1127
    %v1160 = vunpack.c.l.b16 %v1128
    %v1161 = vunpack.c.l.b16 %v1129
    %v1162 = vunpack.c.l.b16 %v1130
    %v1163 = vpack.c.b16 %v1148, %v1147
    %v1164 = vpack.c.b16 %v1150, %v1149
    %v1165 = vpack.c.b16 %v1152, %v1151
    %v1166 = vpack.c.b16 %v1154, %v1153
    %v1167 = vpack.c.b16 %v1156, %v1155
    %v1168 = vpack.c.b16 %v1158, %v1157
    %v1169 = vpack.c.b16 %v1160, %v1159
    %v1170 = vpack.c.b16 %v1162, %v1161
    %1179 = vmatpush.bf16.msra.mxu0 %v1170
    %1180 = vmatpush.bf16.msra.mxu0 %v1169
    %1181 = vmatpush.bf16.msra.mxu0 %v1168
    %1182 = vmatpush.bf16.msra.mxu0 %v1167
    %1183 = vmatpush.bf16.msra.mxu0 %v1166
    %1184 = vmatpush.bf16.msra.mxu0 %v1165
    %1185 = vmatpush.bf16.msra.mxu0 %v1164
    %1186 = vmatpush.bf16.msra.mxu0 %v1163
    %1187 = vmatmul.bf16.gmra.mxu0 %v1098
    %v1188 = vpop.f32.mrf.mxu0
    %v1189 = vadd.f32 0.0, %v1188
    %v1190 = vpop.f32.mrf.mxu0
    %v1191 = vadd.f32 0.0, %v1190
    %1192 = vdwg.mxu0
    %v1193 = vpack.c.bf16 %v1191, %v1189
    %1194 = vmatpush.bf16.msra.mxu0 0
    %1195 = vmatpush.bf16.msra.mxu0 0
    %1196 = vmatpush.bf16.msra.mxu0 0
    %1197 = vmatpush.bf16.msra.mxu0 0
    %1198 = vmatpush.bf16.msra.mxu0 0
    %1199 = vmatpush.bf16.msra.mxu0 0
    %1200 = vmatpush.bf16.msra.mxu0 0
    %1201 = vmatpush.bf16.msra.mxu0 %v1193
    %1202 = vmatmul.bf16.gmra.mxu0 %v358
    %v1203 = vpop.f32.mrf.mxu0
    %v1204 = vadd.f32 0.0, %v1203
    %v1205 = vpop.f32.mrf.mxu0
    %v1206 = vadd.f32 0.0, %v1205
    %1207 = vdwg.mxu0
    %v1224 = vunpack.c.l.b16 %v1099
    %v1225 = vunpack.c.l.b16 %v1100
    %v1226 = vunpack.c.l.b16 %v1101
    %v1227 = vunpack.c.l.b16 %v1102
    %v1228 = vunpack.c.l.b16 %v1103
    %v1229 = vunpack.c.l.b16 %v1104
    %v1230 = vunpack.c.l.b16 %v1105
    %v1231 = vunpack.c.l.b16 %v1106
    %v1232 = vunpack.c.l.b16 %v1107
    %v1233 = vunpack.c.l.b16 %v1108
    %v1234 = vunpack.c.l.b16 %v1109
    %v1235 = vunpack.c.l.b16 %v1110
    %v1236 = vunpack.c.l.b16 %v1111
    %v1237 = vunpack.c.l.b16 %v1112
    %v1238 = vunpack.c.l.b16 %v1113
    %v1239 = vunpack.c.l.b16 %v1114
    %v1240 = vpack.c.b16 %v1225, %v1224
    %v1241 = vpack.c.b16 %v1227, %v1226
    %v1242 = vpack.c.b16 %v1229, %v1228
    %v1243 = vpack.c.b16 %v1231, %v1230
    %v1244 = vpack.c.b16 %v1233, %v1232
    %v1245 = vpack.c.b16 %v1235, %v1234
    %v1246 = vpack.c.b16 %v1237, %v1236
    %v1247 = vpack.c.b16 %v1239, %v1238
    %1256 = vmatpush.bf16.msra.mxu0 %v1247
    %1257 = vmatpush.bf16.msra.mxu0 %v1246
    %1258 = vmatpush.bf16.msra.mxu0 %v1245
    %1259 = vmatpush.bf16.msra.mxu0 %v1244
    %1260 = vmatpush.bf16.msra.mxu0 %v1243
    %1261 = vmatpush.bf16.msra.mxu0 %v1242
    %1262 = vmatpush.bf16.msra.mxu0 %v1241
    %1263 = vmatpush.bf16.msra.mxu0 %v1240
    %1264 = vmatmul.bf16.gmra.mxu0 %v1098
    %v1265 = vpop.f32.mrf.mxu0
    %v1266 = vadd.f32 %v1204, %v1265
    %v1267 = vpop.f32.mrf.mxu0
    %v1268 = vadd.f32 %v1206, %v1267
    %1269 = vdwg.mxu0
    %s1270 = scalar_lea.vmem [#allocation11], 64
    %v1271 = vld [vmem:[%s1270] sm:$0xf]
    %v1272 = vld [vmem:[%s1270 + $0x4] sm:$0xf]
    %v1273 = vld [vmem:[%s1270 + $0x8] sm:$0xf]
    %v1274 = vld [vmem:[%s1270 + $0xc] sm:$0xf]
    %v1275 = vld [vmem:[%s1270 + $0x10] sm:$0xf]
    %v1276 = vld [vmem:[%s1270 + $0x14] sm:$0xf]
    %v1277 = vld [vmem:[%s1270 + $0x18] sm:$0xf]
    %v1278 = vld [vmem:[%s1270 + $0x1c] sm:$0xf]
    %v1279 = vld [vmem:[%s1270 + $0x20] sm:$0xf]
    %v1280 = vld [vmem:[%s1270 + $0x24] sm:$0xf]
    %v1281 = vld [vmem:[%s1270 + $0x28] sm:$0xf]
    %v1282 = vld [vmem:[%s1270 + $0x2c] sm:$0xf]
    %v1283 = vld [vmem:[%s1270 + $0x30] sm:$0xf]
    %v1284 = vld [vmem:[%s1270 + $0x34] sm:$0xf]
    %v1285 = vld [vmem:[%s1270 + $0x38] sm:$0xf]
    %v1286 = vld [vmem:[%s1270 + $0x3c] sm:$0xf]
    %v1303 = vunpack.c.l.b16 %v1271
    %v1304 = vunpack.c.l.b16 %v1272
    %v1305 = vunpack.c.l.b16 %v1273
    %v1306 = vunpack.c.l.b16 %v1274
    %v1307 = vunpack.c.l.b16 %v1275
    %v1308 = vunpack.c.l.b16 %v1276
    %v1309 = vunpack.c.l.b16 %v1277
    %v1310 = vunpack.c.l.b16 %v1278
    %v1311 = vunpack.c.l.b16 %v1279
    %v1312 = vunpack.c.l.b16 %v1280
    %v1313 = vunpack.c.l.b16 %v1281
    %v1314 = vunpack.c.l.b16 %v1282
    %v1315 = vunpack.c.l.b16 %v1283
    %v1316 = vunpack.c.l.b16 %v1284
    %v1317 = vunpack.c.l.b16 %v1285
    %v1318 = vunpack.c.l.b16 %v1286
    %v1319 = vpack.c.b16 %v1304, %v1303
    %v1320 = vpack.c.b16 %v1306, %v1305
    %v1321 = vpack.c.b16 %v1308, %v1307
    %v1322 = vpack.c.b16 %v1310, %v1309
    %v1323 = vpack.c.b16 %v1312, %v1311
    %v1324 = vpack.c.b16 %v1314, %v1313
    %v1325 = vpack.c.b16 %v1316, %v1315
    %v1326 = vpack.c.b16 %v1318, %v1317
    %1335 = vmatpush.bf16.msra.mxu0 %v1326
    %1336 = vmatpush.bf16.msra.mxu0 %v1325
    %1337 = vmatpush.bf16.msra.mxu0 %v1324
    %1338 = vmatpush.bf16.msra.mxu0 %v1323
    %1339 = vmatpush.bf16.msra.mxu0 %v1322
    %1340 = vmatpush.bf16.msra.mxu0 %v1321
    %1341 = vmatpush.bf16.msra.mxu0 %v1320
    %1342 = vmatpush.bf16.msra.mxu0 %v1319
    %1343 = vmatmul.bf16.gmra.mxu0 %v1098
    %v1344 = vpop.f32.mrf.mxu0
    %v1345 = vadd.f32 0.0, %v1344
    %v1346 = vpop.f32.mrf.mxu0
    %v1347 = vadd.f32 0.0, %v1346
    %1348 = vdwg.mxu0
    %v1349 = vpack.c.bf16 %v1347, %v1345
    %1350 = vmatpush.bf16.msra.mxu0 0
    %1351 = vmatpush.bf16.msra.mxu0 0
    %1352 = vmatpush.bf16.msra.mxu0 0
    %1353 = vmatpush.bf16.msra.mxu0 0
    %1354 = vmatpush.bf16.msra.mxu0 0
    %1355 = vmatpush.bf16.msra.mxu0 0
    %1356 = vmatpush.bf16.msra.mxu0 0
    %1357 = vmatpush.bf16.msra.mxu0 %v1349
    %1358 = vmatmul.bf16.gmra.mxu0 %v525
    %v1359 = vpop.f32.mrf.mxu0
    %v1360 = vadd.f32 0.0, %v1359
    %v1361 = vpop.f32.mrf.mxu0
    %v1362 = vadd.f32 0.0, %v1361
    %1363 = vdwg.mxu0
    %v1364 = vadd.f32 %v1266, %v1360
    %v1365 = vadd.f32 %v1268, %v1362
    %s1366 = scalar_lea.vmem [#allocation11], 128
    %v1367 = vld [vmem:[%s1366] sm:$0xf]
    %v1368 = vld [vmem:[%s1366 + $0x4] sm:$0xf]
    %v1369 = vld [vmem:[%s1366 + $0x8] sm:$0xf]
    %v1370 = vld [vmem:[%s1366 + $0xc] sm:$0xf]
    %v1371 = vld [vmem:[%s1366 + $0x10] sm:$0xf]
    %v1372 = vld [vmem:[%s1366 + $0x14] sm:$0xf]
    %v1373 = vld [vmem:[%s1366 + $0x18] sm:$0xf]
    %v1374 = vld [vmem:[%s1366 + $0x1c] sm:$0xf]
    %v1375 = vld [vmem:[%s1366 + $0x20] sm:$0xf]
    %v1376 = vld [vmem:[%s1366 + $0x24] sm:$0xf]
    %v1377 = vld [vmem:[%s1366 + $0x28] sm:$0xf]
    %v1378 = vld [vmem:[%s1366 + $0x2c] sm:$0xf]
    %v1379 = vld [vmem:[%s1366 + $0x30] sm:$0xf]
    %v1380 = vld [vmem:[%s1366 + $0x34] sm:$0xf]
    %v1381 = vld [vmem:[%s1366 + $0x38] sm:$0xf]
    %v1382 = vld [vmem:[%s1366 + $0x3c] sm:$0xf]
    %v1399 = vunpack.c.l.b16 %v1367
    %v1400 = vunpack.c.l.b16 %v1368
    %v1401 = vunpack.c.l.b16 %v1369
    %v1402 = vunpack.c.l.b16 %v1370
    %v1403 = vunpack.c.l.b16 %v1371
    %v1404 = vunpack.c.l.b16 %v1372
    %v1405 = vunpack.c.l.b16 %v1373
    %v1406 = vunpack.c.l.b16 %v1374
    %v1407 = vunpack.c.l.b16 %v1375
    %v1408 = vunpack.c.l.b16 %v1376
    %v1409 = vunpack.c.l.b16 %v1377
    %v1410 = vunpack.c.l.b16 %v1378
    %v1411 = vunpack.c.l.b16 %v1379
    %v1412 = vunpack.c.l.b16 %v1380
    %v1413 = vunpack.c.l.b16 %v1381
    %v1414 = vunpack.c.l.b16 %v1382
    %v1415 = vpack.c.b16 %v1400, %v1399
    %v1416 = vpack.c.b16 %v1402, %v1401
    %v1417 = vpack.c.b16 %v1404, %v1403
    %v1418 = vpack.c.b16 %v1406, %v1405
    %v1419 = vpack.c.b16 %v1408, %v1407
    %v1420 = vpack.c.b16 %v1410, %v1409
    %v1421 = vpack.c.b16 %v1412, %v1411
    %v1422 = vpack.c.b16 %v1414, %v1413
    %1431 = vmatpush.bf16.msra.mxu0 %v1422
    %1432 = vmatpush.bf16.msra.mxu0 %v1421
    %1433 = vmatpush.bf16.msra.mxu0 %v1420
    %1434 = vmatpush.bf16.msra.mxu0 %v1419
    %1435 = vmatpush.bf16.msra.mxu0 %v1418
    %1436 = vmatpush.bf16.msra.mxu0 %v1417
    %1437 = vmatpush.bf16.msra.mxu0 %v1416
    %1438 = vmatpush.bf16.msra.mxu0 %v1415
    %1439 = vmatmul.bf16.gmra.mxu0 %v1098
    %v1440 = vpop.f32.mrf.mxu0
    %v1441 = vadd.f32 0.0, %v1440
    %v1442 = vpop.f32.mrf.mxu0
    %v1443 = vadd.f32 0.0, %v1442
    %1444 = vdwg.mxu0
    %v1445 = vpack.c.bf16 %v1443, %v1441
    %1446 = vmatpush.bf16.msra.mxu0 0
    %1447 = vmatpush.bf16.msra.mxu0 0
    %1448 = vmatpush.bf16.msra.mxu0 0
    %1449 = vmatpush.bf16.msra.mxu0 0
    %1450 = vmatpush.bf16.msra.mxu0 0
    %1451 = vmatpush.bf16.msra.mxu0 0
    %1452 = vmatpush.bf16.msra.mxu0 0
    %1453 = vmatpush.bf16.msra.mxu0 %v1445
    %1454 = vmatmul.bf16.gmra.mxu0 %v632
    %v1455 = vpop.f32.mrf.mxu0
    %v1456 = vadd.f32 0.0, %v1455
    %v1457 = vpop.f32.mrf.mxu0
    %v1458 = vadd.f32 0.0, %v1457
    %1459 = vdwg.mxu0
    %v1460 = vadd.f32 %v1364, %v1456
    %v1461 = vadd.f32 %v1365, %v1458
    %v1462 = vld [vmem:[#allocation14] sm:$0xf]
    %v1463 = vld [vmem:[#allocation14 + $0x4] sm:$0xf]
    %v1464 = vld [vmem:[#allocation14 + $0x8] sm:$0xf]
    %v1465 = vld [vmem:[#allocation14 + $0xc] sm:$0xf]
    %v1466 = vld [vmem:[#allocation14 + $0x10] sm:$0xf]
    %v1467 = vld [vmem:[#allocation14 + $0x14] sm:$0xf]
    %v1468 = vld [vmem:[#allocation14 + $0x18] sm:$0xf]
    %v1469 = vld [vmem:[#allocation14 + $0x1c] sm:$0xf]
    %v1470 = vld [vmem:[#allocation14 + $0x20] sm:$0xf]
    %v1471 = vld [vmem:[#allocation14 + $0x24] sm:$0xf]
    %v1472 = vld [vmem:[#allocation14 + $0x28] sm:$0xf]
    %v1473 = vld [vmem:[#allocation14 + $0x2c] sm:$0xf]
    %v1474 = vld [vmem:[#allocation14 + $0x30] sm:$0xf]
    %v1475 = vld [vmem:[#allocation14 + $0x34] sm:$0xf]
    %v1476 = vld [vmem:[#allocation14 + $0x38] sm:$0xf]
    %v1477 = vld [vmem:[#allocation14 + $0x3c] sm:$0xf]
    %v1494 = vunpack.c.l.b16 %v1462
    %v1495 = vunpack.c.l.b16 %v1463
    %v1496 = vunpack.c.l.b16 %v1464
    %v1497 = vunpack.c.l.b16 %v1465
    %v1498 = vunpack.c.l.b16 %v1466
    %v1499 = vunpack.c.l.b16 %v1467
    %v1500 = vunpack.c.l.b16 %v1468
    %v1501 = vunpack.c.l.b16 %v1469
    %v1502 = vunpack.c.l.b16 %v1470
    %v1503 = vunpack.c.l.b16 %v1471
    %v1504 = vunpack.c.l.b16 %v1472
    %v1505 = vunpack.c.l.b16 %v1473
    %v1506 = vunpack.c.l.b16 %v1474
    %v1507 = vunpack.c.l.b16 %v1475
    %v1508 = vunpack.c.l.b16 %v1476
    %v1509 = vunpack.c.l.b16 %v1477
    %v1510 = vpack.c.b16 %v1495, %v1494
    %v1511 = vpack.c.b16 %v1497, %v1496
    %v1512 = vpack.c.b16 %v1499, %v1498
    %v1513 = vpack.c.b16 %v1501, %v1500
    %v1514 = vpack.c.b16 %v1503, %v1502
    %v1515 = vpack.c.b16 %v1505, %v1504
    %v1516 = vpack.c.b16 %v1507, %v1506
    %v1517 = vpack.c.b16 %v1509, %v1508
    %1526 = vmatpush.bf16.msra.mxu0 %v1517
    %1527 = vmatpush.bf16.msra.mxu0 %v1516
    %1528 = vmatpush.bf16.msra.mxu0 %v1515
    %1529 = vmatpush.bf16.msra.mxu0 %v1514
    %1530 = vmatpush.bf16.msra.mxu0 %v1513
    %1531 = vmatpush.bf16.msra.mxu0 %v1512
    %1532 = vmatpush.bf16.msra.mxu0 %v1511
    %1533 = vmatpush.bf16.msra.mxu0 %v1510
    %1534 = vmatmul.bf16.gmra.mxu0 %v1098
    %v1535 = vpop.f32.mrf.mxu0
    %v1536 = vadd.f32 0.0, %v1535
    %v1537 = vpop.f32.mrf.mxu0
    %v1538 = vadd.f32 0.0, %v1537
    %1539 = vdwg.mxu0
    %v1540 = vadd.f32 %v1460, %v1536
    %v1541 = vadd.f32 %v1461, %v1538
    %1542 = vst [vmem:[#allocation16] sm:$0xff] %v1540
    %1543 = vst [vmem:[#allocation16 + $0x8] sm:$0xff] %v1541
    // Predicated region
    $region78: #{_forward_impl.1} parent=1 // pred_check
      _
    $region79: #{_forward_impl.1} parent=1 // pred_check_branch
      %1545 = sbr.rel (0) target = $region81
    $region80: #{_forward_impl.1} parent=1 // pred_region
      %1547 = vsyncadd [#allocation4], 0
      %s1548 = sshll.u32 [#allocation16], 4
      %s1549 = int_to_ptr.vmem [resolvable:$true] %s1548
      %s1550 = sshll.u32 %s11, 4
      %s1551 = int_to_ptr.hbm [resolvable:$true] %s1550
      %1556 = dma.vmem_to_hbm [thread:$0]  %s1549, 256, %s1551, [#allocation4], 128, 128, 8
    $region81: #{_forward_impl.1} parent=1 // pred_fallthru
      _
    // Predicated region
    $region82: #{_forward_impl.1} parent=1 // pred_check
      _
    $region83: #{_forward_impl.1} parent=1 // pred_check_branch
      %1558 = sbr.rel (0) target = $region85
    $region84: #{_forward_impl.1} parent=1 // pred_region
      %1560 = dma.done [#allocation4], 256
    $region85: #{_forward_impl.1} parent=1 // pred_fallthru
      _
    %1561 = vsyncpa [#allocation3], 1
    %1562 = vsyncpa [#allocation6], 1
    %1563 = vsyncpa [#allocation9], 1
    %1564 = vsyncpa [#allocation12], 1
    %1565 = vsyncpa [#allocation15], 1
    %1566 = vsyncpa [#allocation4], 1

</llo_original>
